<compile_context>
chip_gen: v5e
topology: v5e:2x2
jax: 0.10.0
libtpu: 0.0.40
codegen_flags: <defaults>
</compile_context>

<pallas_src>
import jax
import jax.numpy as jnp
from jax import lax
from jax.experimental import pallas as pl
from jax.experimental.pallas import tpu as pltpu

# ----------------------------- model config ---------------------------------
C_IN = 4                       # observation channels
H = W = 36                     # 36 -> 8 -> 3 -> 1 through the conv stack
DEPTHS = (32, 64, 64)
FINAL_LAYER = 512
NUM_ACTIONS = 6
N_FLATTEN = DEPTHS[2]          # conv3 output is 1x1 spatial -> 64

BATCH = 16                     # total examples per forward (perf review: raise batch)
BATCH_TILE = 8                 # examples per grid step (sublane-friendly)

O1, O2 = 8, 3                  # conv1 / conv2 output spatial sizes

# 128-aligned offsets inside the packed bias row and the packed weight slab.
_B1, _B2, _B3, _BH, _BQ = 0, 128, 256, 384, 1408
_BIAS_W = 1536
_W2, _W3, _WH = 0, 512, 1152
_SLAB_W = 2176


# ----------------------------- fused Pallas kernel ---------------------------
def fused_dqn_kernel(p1_ref, w1t_ref, wslab_ref, wqt_ref, b_ref, q_ref):
    f32 = jnp.float32
    relu = lambda v: jnp.maximum(v, 0.0)
    nt_dims = (((1,), (1,)), ((), ()))            # A @ B^T, contract on both dim 1

    def dot_nt(a, b):
        return lax.dot_general(a, b, nt_dims, preferred_element_type=f32)

    bt = q_ref.shape[0]                           # batch tile (static)
    G = 16 * bt                                   # rows per (ri, rj) group

    # ---- conv1: 8x8 / stride 4 ------------------------------------------------
    # p1 rows are ((ri,rj), I, J, b) with conv1 output position (2I+ri, 2J+rj);
    # lanes are the flattened patch (c, kh, kw).
    h1 = relu(dot_nt(p1_ref[...], w1t_ref[...]) + b_ref[:, _B1:_B1 + 32])   # (64*bt, 32)

    # Move the (ri, rj) offset into lanes: rows (I, J, b), lanes (ri, rj, c).
    h1 = jnp.concatenate([h1[g * G:(g + 1) * G, :] for g in range(4)], axis=1)   # (G, 128)
    h1 = h1.reshape(4, 4, bt, 4 * DEPTHS[0])      # (I, J, b, 128) stride-2 superpixel grid

    # ---- conv2: 4x4 / stride 2 == 2x2 window over the superpixel grid ---------
    p2 = jnp.concatenate([h1[di:di + O2, dj:dj + O2, :, :]
                          for di in range(2) for dj in range(2)], axis=-1)   # (3,3,bt,512)
    p2 = p2.reshape(O2 * O2 * bt, 16 * DEPTHS[0])                            # rows (oh,ow,b)
    h2 = relu(dot_nt(p2, wslab_ref[:, _W2:_W2 + 512]) + b_ref[:, _B2:_B2 + 64])  # (9*bt, 64)

    # ---- conv3: 3x3 / stride 1 (1x1 output): patch = all 9 conv2 positions ----
    p3 = jnp.concatenate([h2[p * bt:(p + 1) * bt, :] for p in range(9)], axis=1)  # (bt, 576)
    feat = relu(dot_nt(p3, wslab_ref[:, _W3:_W3 + 576]) + b_ref[:, _B3:_B3 + 64])  # (bt, 64)

    # ---- dueling head: hid = [fc_V | fc_A]; dueling combine folded into wq ----
    hid = relu(jnp.dot(feat, wslab_ref[:, _WH:_WH + 1024],
                       preferred_element_type=f32) + b_ref[:, _BH:_BH + 1024])    # (bt, 1024)
    q = dot_nt(hid, wqt_ref[...]) + b_ref[:, _BQ:_BQ + 8]                          # (bt, 8)
    q_ref[...] = q[:, :NUM_ACTIONS].astype(q_ref.dtype)


# ----------------------------- forward wrapper -------------------------------
def _conv1_patches(x, bt):
    """im2col for conv1, emitted in the exact row/lane order the kernel expects
    (layout plumbing only; runs as cheap XLA relayouts in the wrapper)."""
    b = x.shape[0]
    nt = b // bt
    xs = x.reshape(b, C_IN, 9, 4, 9, 4)            # (b, c, P, u, Q, v): pixel (4P+u, 4Q+v)
    parts = [xs[:, :, di:di + O1, :, dj:dj + O1, :]
             for di in range(2) for dj in range(2)]
    pp = jnp.stack(parts, axis=0).reshape(2, 2, nt, bt, C_IN, 4, 2, 4, 4, 2, 4)
    # dims: (di, dj, tile, bl, c, I, ri, u, J, rj, v);
    # conv1 output position = (2I+ri, 2J+rj), patch offset (kh, kw) = (4di+u, 4dj+v).
    pp = pp.transpose(2, 6, 9, 5, 8, 3, 4, 0, 7, 1, 10)
    # -> (tile, ri, rj, I, J, bl, c, di, u, dj, v)
    return pp.reshape(b * O1 * O1, C_IN * 64)      # rows (tile,(ri,rj),I,J,bl); lanes (c,kh,kw)


def dueling_dqn_forward(x, kp, *, bt=BATCH_TILE):
    b = x.shape[0]
    assert x.shape == (b, C_IN, H, W) and b % bt == 0
    nt = b // bt
    p1 = _conv1_patches(x, bt)                     # (b*64, 256)

    macs = b * (O1 * O1 * 256 * 32 + 9 * 512 * 64 + 576 * 64 + 64 * 1024 + 1024 * 8)
    bytes_accessed = 4 * (p1.size + 32 * 256 + 64 * _SLAB_W + 8 * 1024 + _BIAS_W
                          + b * NUM_ACTIONS)

    return pl.pallas_call(
        fused_dqn_kernel,
        out_shape=jax.ShapeDtypeStruct((b, NUM_ACTIONS), jnp.float32),
        grid=(nt,),
        in_specs=[
            pl.BlockSpec((bt * O1 * O1, C_IN * 64), lambda i: (i, 0)),   # activations (tiled)
            pl.BlockSpec((DEPTHS[0], C_IN * 64), lambda i: (0, 0)),      # w1^T   (resident)
            pl.BlockSpec((64, _SLAB_W), lambda i: (0, 0)),               # w2|w3|wh1 slab
            pl.BlockSpec((8, 2 * FINAL_LAYER), lambda i: (0, 0)),        # folded head wq^T
            pl.BlockSpec((1, _BIAS_W), lambda i: (0, 0)),                # all biases
        ],
        out_specs=pl.BlockSpec((bt, NUM_ACTIONS), lambda i: (i, 0)),
        compiler_params=pltpu.CompilerParams(dimension_semantics=("parallel",)),
        cost_estimate=pl.CostEstimate(flops=2 * macs, transcendentals=0,
                                      bytes_accessed=bytes_accessed),
    )(p1, kp["w1t"], kp["wslab"], kp["wqt"], kp["bias"])


# ----------------------------- one-time parameter packing --------------------
def pack_params(p):
    """Lay out torch-style params into dense, matmul-ready kernel slabs (runs once)."""
    f32 = jnp.float32
    # conv1: lanes (c, kh, kw); stored transposed (oc, K) -> lane-dense.
    w1t = p["conv1_w"].reshape(DEPTHS[0], C_IN * 64).astype(f32)                  # (32, 256)
    # conv2: K order (di, dj, ri, rj, c) with (kh, kw) = (2di+ri, 2dj+rj).
    w2t = p["conv2_w"].reshape(DEPTHS[1], DEPTHS[0], 2, 2, 2, 2)                  # (oc,c,di,ri,dj,rj)
    w2t = w2t.transpose(0, 2, 4, 3, 5, 1).reshape(DEPTHS[1], 16 * DEPTHS[0])      # (64, 512)
    # conv3: K order (kh, kw, c).
    w3t = p["conv3_w"].transpose(0, 2, 3, 1).reshape(DEPTHS[2], 9 * DEPTHS[1])    # (64, 576)
    # head-1: [fc_V | fc_A] in natural (K, N) orientation (already lane-dense).
    wh1 = jnp.concatenate([p["fcV_w"].T, p["fcA_w"].T], axis=1)                   # (64, 1024)
    # head-2 with the dueling combine folded in, transposed & padded to 8 rows.
    a_c = p["A_w"] - jnp.mean(p["A_w"], axis=0, keepdims=True)                    # (6, 512)
    wqt = jnp.zeros((8, 2 * FINAL_LAYER), f32)
    wqt = wqt.at[:NUM_ACTIONS, :FINAL_LAYER].set(
        jnp.broadcast_to(p["V_w"], (NUM_ACTIONS, FINAL_LAYER)))
    wqt = wqt.at[:NUM_ACTIONS, FINAL_LAYER:].set(a_c)

    wslab = jnp.zeros((64, _SLAB_W), f32)
    wslab = wslab.at[:, _W2:_W2 + 512].set(w2t)
    wslab = wslab.at[:, _W3:_W3 + 576].set(w3t)
    wslab = wslab.at[:, _WH:_WH + 1024].set(wh1)

    bias = jnp.zeros((1, _BIAS_W), f32)
    bias = bias.at[0, _B1:_B1 + 32].set(p["conv1_b"])
    bias = bias.at[0, _B2:_B2 + 64].set(p["conv2_b"])
    bias = bias.at[0, _B3:_B3 + 64].set(p["conv3_b"])
    bias = bias.at[0, _BH:_BH + 1024].set(jnp.concatenate([p["fcV_b"], p["fcA_b"]]))
    bias = bias.at[0, _BQ:_BQ + NUM_ACTIONS].set(
        p["V_b"][0] + p["A_b"] - jnp.mean(p["A_b"]))

    return {"w1t": w1t, "wslab": wslab, "wqt": wqt, "bias": bias}


# ----------------------------- reference (plain JAX) -------------------------
def reference_forward(x, p):
    dn = ("NCHW", "OIHW", "NCHW")

    def conv(h, w, b, s):
        h = lax.conv_general_dilated(h, w, (s, s), "VALID", dimension_numbers=dn)
        return jnp.maximum(h + b[None, :, None, None], 0.0)

    h = conv(x, p["conv1_w"], p["conv1_b"], 4)
    h = conv(h, p["conv2_w"], p["conv2_b"], 2)
    h = conv(h, p["conv3_w"], p["conv3_b"], 1)
    f = h.reshape(x.shape[0], -1)
    vh = jnp.maximum(f @ p["fcV_w"].T + p["fcV_b"], 0.0)
    ah = jnp.maximum(f @ p["fcA_w"].T + p["fcA_b"], 0.0)
    V = vh @ p["V_w"].T + p["V_b"]
    A = ah @ p["A_w"].T + p["A_b"]
    return V + A - jnp.mean(A, axis=1, keepdims=True)


# ----------------------------- params (torch layout) -------------------------
def init_params(key):
    ks = jax.random.split(key, 16)
    s = 0.05

    def w(k, shape):
        return (s * jax.random.normal(k, shape)).astype(jnp.float32)

    return {
        "conv1_w": w(ks[0], (DEPTHS[0], C_IN, 8, 8)),
        "conv1_b": w(ks[1], (DEPTHS[0],)),
        "conv2_w": w(ks[2], (DEPTHS[1], DEPTHS[0], 4, 4)),
        "conv2_b": w(ks[3], (DEPTHS[1],)),
        "conv3_w": w(ks[4], (DEPTHS[2], DEPTHS[1], 3, 3)),
        "conv3_b": w(ks[5], (DEPTHS[2],)),
        "fcV_w": w(ks[6], (FINAL_LAYER, N_FLATTEN)),
        "fcV_b": w(ks[7], (FINAL_LAYER,)),
        "fcA_w": w(ks[8], (FINAL_LAYER, N_FLATTEN)),
        "fcA_b": w(ks[9], (FINAL_LAYER,)),
        "V_w": w(ks[10], (1, FINAL_LAYER)),
        "V_b": w(ks[11], (1,)),
        "A_w": w(ks[12], (NUM_ACTIONS, FINAL_LAYER)),
        "A_b": w(ks[13], (NUM_ACTIONS,)),
    }


# ----------------------------- main -------------------------------------------
if __name__ == "__main__":
    key = jax.random.PRNGKey(0)
    k_x, k_p = jax.random.split(key)
    x = jax.random.uniform(k_x, (BATCH, C_IN, H, W), dtype=jnp.float32)
    params = init_params(k_p)
    kparams = pack_params(params)              # one-time layout prep, outside jit

    fwd = jax.jit(dueling_dqn_forward)
    q = jax.block_until_ready(fwd(x, kparams))

    q_ref = reference_forward(x, params)
    assert q.shape == (BATCH, NUM_ACTIONS), q.shape
    assert jnp.allclose(q, q_ref, rtol=1e-4, atol=2e-5), (
        "mismatch vs reference: max abs diff "
        f"{float(jnp.max(jnp.abs(q - q_ref)))}")

    print("KERNEL_OK")
</pallas_src>

<mosaic_0001>
module attributes {stable_mosaic.version = 11 : i64} {
  func.func @fused_dqn_kernel(%arg0: i32, %arg1: memref<512x256xf32, #tpu.memory_space<vmem>>, %arg2: memref<32x256xf32, #tpu.memory_space<vmem>>, %arg3: memref<64x2176xf32, #tpu.memory_space<vmem>>, %arg4: memref<8x1024xf32, #tpu.memory_space<vmem>>, %arg5: memref<1x1536xf32, #tpu.memory_space<vmem>>, %arg6: memref<8x6xf32, #tpu.memory_space<vmem>>) attributes {dimension_semantics = [#tpu.dimension_semantics<parallel>], iteration_bounds = array<i64: 2>, scalar_prefetch = 0 : i64, scratch_operands = 0 : i64, tpu.core_type = #tpu.core_type<tc>, window_params = [{transform_indices = @transform_0, window_bounds = array<i64: 512, 256>}, {pipeline_mode = #tpu.pipeline_mode<synchronous>, transform_indices = @transform_1, window_bounds = array<i64: 32, 256>}, {pipeline_mode = #tpu.pipeline_mode<synchronous>, transform_indices = @transform_2, window_bounds = array<i64: 64, 2176>}, {pipeline_mode = #tpu.pipeline_mode<synchronous>, transform_indices = @transform_3, window_bounds = array<i64: 8, 1024>}, {pipeline_mode = #tpu.pipeline_mode<synchronous>, transform_indices = @transform_4, window_bounds = array<i64: 1, 1536>}, {transform_indices = @transform_5, window_bounds = array<i64: 8, 6>}]} {
    %c0 = arith.constant 0 : index
    %c0_0 = arith.constant 0 : index
    %0 = vector.load %arg1[%c0, %c0_0] : memref<512x256xf32, #tpu.memory_space<vmem>>, vector<512x256xf32>
    %c0_1 = arith.constant 0 : index
    %c0_2 = arith.constant 0 : index
    %1 = vector.load %arg2[%c0_1, %c0_2] : memref<32x256xf32, #tpu.memory_space<vmem>>, vector<32x256xf32>
    %cst = arith.constant dense<0.000000e+00> : vector<512x32xf32>
    %2 = tpu.matmul %0, %1, %cst {dimension_numbers = #tpu.dot_dimension_numbers<[1], [1], [0], [0], [0, 0, 1, 0], [], []>} : vector<512x256xf32>, vector<32x256xf32>, vector<512x32xf32> -> vector<512x32xf32>
    %c0_3 = arith.constant 0 : index
    %c0_4 = arith.constant 0 : index
    %3 = vector.load %arg5[%c0_3, %c0_4] : memref<1x1536xf32, #tpu.memory_space<vmem>>, vector<1x32xf32>
    %4 = vector.broadcast %3 : vector<1x32xf32> to vector<512x32xf32>
    %5 = arith.addf %2, %4 : vector<512x32xf32>
    %cst_5 = arith.constant 0.000000e+00 : f32
    %6 = vector.broadcast %cst_5 : f32 to vector<512x32xf32>
    %7 = arith.maximumf %5, %6 : vector<512x32xf32>
    %8 = vector.extract_strided_slice %7 {offsets = [0, 0], sizes = [128, 32], strides = [1, 1]} : vector<512x32xf32> to vector<128x32xf32>
    %9 = vector.extract_strided_slice %7 {offsets = [128, 0], sizes = [128, 32], strides = [1, 1]} : vector<512x32xf32> to vector<128x32xf32>
    %10 = vector.extract_strided_slice %7 {offsets = [256, 0], sizes = [128, 32], strides = [1, 1]} : vector<512x32xf32> to vector<128x32xf32>
    %11 = vector.extract_strided_slice %7 {offsets = [384, 0], sizes = [128, 32], strides = [1, 1]} : vector<512x32xf32> to vector<128x32xf32>
    %12 = tpu.concatenate %8, %9, %10, %11 in 1 : vector<128x32xf32>, vector<128x32xf32>, vector<128x32xf32>, vector<128x32xf32> -> vector<128x128xf32>
    %13 = vector.shape_cast %12 : vector<128x128xf32> to vector<4x4x8x128xf32>
    %14 = vector.extract_strided_slice %13 {offsets = [0, 0, 0, 0], sizes = [3, 3, 8, 128], strides = [1, 1, 1, 1]} : vector<4x4x8x128xf32> to vector<3x3x8x128xf32>
    %15 = vector.extract_strided_slice %13 {offsets = [0, 1, 0, 0], sizes = [3, 3, 8, 128], strides = [1, 1, 1, 1]} : vector<4x4x8x128xf32> to vector<3x3x8x128xf32>
    %16 = vector.extract_strided_slice %13 {offsets = [1, 0, 0, 0], sizes = [3, 3, 8, 128], strides = [1, 1, 1, 1]} : vector<4x4x8x128xf32> to vector<3x3x8x128xf32>
    %17 = vector.extract_strided_slice %13 {offsets = [1, 1, 0, 0], sizes = [3, 3, 8, 128], strides = [1, 1, 1, 1]} : vector<4x4x8x128xf32> to vector<3x3x8x128xf32>
    %18 = tpu.concatenate %14, %15, %16, %17 in 3 : vector<3x3x8x128xf32>, vector<3x3x8x128xf32>, vector<3x3x8x128xf32>, vector<3x3x8x128xf32> -> vector<3x3x8x512xf32>
    %19 = vector.shape_cast %18 : vector<3x3x8x512xf32> to vector<72x512xf32>
    %c0_6 = arith.constant 0 : index
    %c0_7 = arith.constant 0 : index
    %20 = vector.load %arg3[%c0_6, %c0_7] : memref<64x2176xf32, #tpu.memory_space<vmem>>, vector<64x512xf32>
    %cst_8 = arith.constant dense<0.000000e+00> : vector<72x64xf32>
    %21 = tpu.matmul %19, %20, %cst_8 {dimension_numbers = #tpu.dot_dimension_numbers<[1], [1], [0], [0], [0, 0, 1, 0], [], []>} : vector<72x512xf32>, vector<64x512xf32>, vector<72x64xf32> -> vector<72x64xf32>
    %c0_9 = arith.constant 0 : index
    %c128 = arith.constant 128 : index
    %22 = vector.load %arg5[%c0_9, %c128] : memref<1x1536xf32, #tpu.memory_space<vmem>>, vector<1x64xf32>
    %23 = vector.broadcast %22 : vector<1x64xf32> to vector<72x64xf32>
    %24 = arith.addf %21, %23 : vector<72x64xf32>
    %cst_10 = arith.constant 0.000000e+00 : f32
    %25 = vector.broadcast %cst_10 : f32 to vector<72x64xf32>
    %26 = arith.maximumf %24, %25 : vector<72x64xf32>
    %27 = vector.extract_strided_slice %26 {offsets = [0, 0], sizes = [8, 64], strides = [1, 1]} : vector<72x64xf32> to vector<8x64xf32>
    %28 = vector.extract_strided_slice %26 {offsets = [8, 0], sizes = [8, 64], strides = [1, 1]} : vector<72x64xf32> to vector<8x64xf32>
    %29 = vector.extract_strided_slice %26 {offsets = [16, 0], sizes = [8, 64], strides = [1, 1]} : vector<72x64xf32> to vector<8x64xf32>
    %30 = vector.extract_strided_slice %26 {offsets = [24, 0], sizes = [8, 64], strides = [1, 1]} : vector<72x64xf32> to vector<8x64xf32>
    %31 = vector.extract_strided_slice %26 {offsets = [32, 0], sizes = [8, 64], strides = [1, 1]} : vector<72x64xf32> to vector<8x64xf32>
    %32 = vector.extract_strided_slice %26 {offsets = [40, 0], sizes = [8, 64], strides = [1, 1]} : vector<72x64xf32> to vector<8x64xf32>
    %33 = vector.extract_strided_slice %26 {offsets = [48, 0], sizes = [8, 64], strides = [1, 1]} : vector<72x64xf32> to vector<8x64xf32>
    %34 = vector.extract_strided_slice %26 {offsets = [56, 0], sizes = [8, 64], strides = [1, 1]} : vector<72x64xf32> to vector<8x64xf32>
    %35 = vector.extract_strided_slice %26 {offsets = [64, 0], sizes = [8, 64], strides = [1, 1]} : vector<72x64xf32> to vector<8x64xf32>
    %36 = tpu.concatenate %27, %28, %29, %30, %31, %32, %33, %34, %35 in 1 : vector<8x64xf32>, vector<8x64xf32>, vector<8x64xf32>, vector<8x64xf32>, vector<8x64xf32>, vector<8x64xf32>, vector<8x64xf32>, vector<8x64xf32>, vector<8x64xf32> -> vector<8x576xf32>
    %c0_11 = arith.constant 0 : index
    %c512 = arith.constant 512 : index
    %37 = vector.load %arg3[%c0_11, %c512] : memref<64x2176xf32, #tpu.memory_space<vmem>>, vector<64x576xf32>
    %cst_12 = arith.constant dense<0.000000e+00> : vector<8x64xf32>
    %38 = tpu.matmul %36, %37, %cst_12 {dimension_numbers = #tpu.dot_dimension_numbers<[1], [1], [0], [0], [0, 0, 1, 0], [], []>} : vector<8x576xf32>, vector<64x576xf32>, vector<8x64xf32> -> vector<8x64xf32>
    %c0_13 = arith.constant 0 : index
    %c256 = arith.constant 256 : index
    %39 = vector.load %arg5[%c0_13, %c256] : memref<1x1536xf32, #tpu.memory_space<vmem>>, vector<1x64xf32>
    %40 = vector.broadcast %39 : vector<1x64xf32> to vector<8x64xf32>
    %41 = arith.addf %38, %40 : vector<8x64xf32>
    %cst_14 = arith.constant 0.000000e+00 : f32
    %42 = vector.broadcast %cst_14 : f32 to vector<8x64xf32>
    %43 = arith.maximumf %41, %42 : vector<8x64xf32>
    %c0_15 = arith.constant 0 : index
    %c1152 = arith.constant 1152 : index
    %44 = vector.load %arg3[%c0_15, %c1152] : memref<64x2176xf32, #tpu.memory_space<vmem>>, vector<64x1024xf32>
    %cst_16 = arith.constant dense<0.000000e+00> : vector<8x1024xf32>
    %45 = tpu.matmul %43, %44, %cst_16 {dimension_numbers = #tpu.dot_dimension_numbers<[1], [0], [0], [1], [0, 0, 1, 1], [], []>} : vector<8x64xf32>, vector<64x1024xf32>, vector<8x1024xf32> -> vector<8x1024xf32>
    %c0_17 = arith.constant 0 : index
    %c384 = arith.constant 384 : index
    %46 = vector.load %arg5[%c0_17, %c384] : memref<1x1536xf32, #tpu.memory_space<vmem>>, vector<1x1024xf32>
    %47 = vector.broadcast %46 : vector<1x1024xf32> to vector<8x1024xf32>
    %48 = arith.addf %45, %47 : vector<8x1024xf32>
    %cst_18 = arith.constant 0.000000e+00 : f32
    %49 = vector.broadcast %cst_18 : f32 to vector<8x1024xf32>
    %50 = arith.maximumf %48, %49 : vector<8x1024xf32>
    %c0_19 = arith.constant 0 : index
    %c0_20 = arith.constant 0 : index
    %51 = vector.load %arg4[%c0_19, %c0_20] : memref<8x1024xf32, #tpu.memory_space<vmem>>, vector<8x1024xf32>
    %cst_21 = arith.constant dense<0.000000e+00> : vector<8x8xf32>
    %52 = tpu.matmul %50, %51, %cst_21 {dimension_numbers = #tpu.dot_dimension_numbers<[1], [1], [0], [0], [0, 0, 1, 0], [], []>} : vector<8x1024xf32>, vector<8x1024xf32>, vector<8x8xf32> -> vector<8x8xf32>
    %c0_22 = arith.constant 0 : index
    %c1408 = arith.constant 1408 : index
    %53 = vector.load %arg5[%c0_22, %c1408] : memref<1x1536xf32, #tpu.memory_space<vmem>>, vector<1x8xf32>
    %54 = vector.broadcast %53 : vector<1x8xf32> to vector<8x8xf32>
    %55 = arith.addf %52, %54 : vector<8x8xf32>
    %56 = vector.extract_strided_slice %55 {offsets = [0, 0], sizes = [8, 6], strides = [1, 1]} : vector<8x8xf32> to vector<8x6xf32>
    %c0_23 = arith.constant 0 : index
    %c0_24 = arith.constant 0 : index
    %57 = vector.load %arg6[%c0_23, %c0_24] : memref<8x6xf32, #tpu.memory_space<vmem>>, vector<8x6xf32>
    tpu.vector_store %arg6[%c0_23, %c0_24], %56 {strides = array<i32>} : memref<8x6xf32, #tpu.memory_space<vmem>>, vector<8x6xf32>,
    return
  }
  func.func @transform_0(%arg0: i32) -> (i32, i32) {
    %c0_i32 = arith.constant 0 : i32
    %c0_i32_0 = arith.constant 0 : i32
    return %arg0, %c0_i32 : i32, i32
  }
  func.func @transform_1(%arg0: i32) -> (i32, i32) {
    %c0_i32 = arith.constant 0 : i32
    %c0_i32_0 = arith.constant 0 : i32
    %c0_i32_1 = arith.constant 0 : i32
    return %c0_i32, %c0_i32_0 : i32, i32
  }
  func.func @transform_2(%arg0: i32) -> (i32, i32) {
    %c0_i32 = arith.constant 0 : i32
    %c0_i32_0 = arith.constant 0 : i32
    %c0_i32_1 = arith.constant 0 : i32
    return %c0_i32, %c0_i32_0 : i32, i32
  }
  func.func @transform_3(%arg0: i32) -> (i32, i32) {
    %c0_i32 = arith.constant 0 : i32
    %c0_i32_0 = arith.constant 0 : i32
    %c0_i32_1 = arith.constant 0 : i32
    return %c0_i32, %c0_i32_0 : i32, i32
  }
  func.func @transform_4(%arg0: i32) -> (i32, i32) {
    %c0_i32 = arith.constant 0 : i32
    %c0_i32_0 = arith.constant 0 : i32
    %c0_i32_1 = arith.constant 0 : i32
    return %c0_i32, %c0_i32_0 : i32, i32
  }
  func.func @transform_5(%arg0: i32) -> (i32, i32) {
    %c0_i32 = arith.constant 0 : i32
    %c0_i32_0 = arith.constant 0 : i32
    return %arg0, %c0_i32 : i32, i32
  }
}

</mosaic_0001>

<llo_original>
// kernel: dueling_dqn_forward.1
$region0: #{dueling_dqn_forward.1}
  #allocation0 [shape = 'u32[]', space=smem, size = 0x4, offset = 0x4, fixed_abs, tag = 'smem constant byte address 0x4 - core index']
  #allocation1 [shape = 'u32[72,128]{1,0:T(1,128)}', space=vmem, size = 0x9000, scoped, tag = 'internal scratch']
  %s0 = inlined_call_operand.vmem [shape: f32[1024,256], index: 0, kind: input, shape index: {}]
  %s1 = inlined_call_operand.vmem [shape: f32[32,256], index: 1, kind: input, shape index: {}]
  %s2 = inlined_call_operand.vmem [shape: f32[64,2176], index: 2, kind: input, shape index: {}]
  %s3 = inlined_call_operand.vmem [shape: f32[8,1024], index: 3, kind: input, shape index: {}]
  %s4 = inlined_call_operand.vmem [shape: f32[1,1536], index: 4, kind: input, shape index: {}]
  %s5 = inlined_call_operand.vmem [shape: f32[16,6], index: 5, kind: output, shape index: {}]
  %s6 = sld [smem:[#allocation0]]
  $region53: #{dueling_dqn_forward.1} parent=0
    _
  %s8 = ssub.s32 1, %s6
  %s9 = scalar_select 0, %s8, %s6
  loop: start=0, step=1, limit=4
  $region2: #{dueling_dqn_forward.1} parent=0 // loop_pre_header
    _
  $region3: #{dueling_dqn_forward.1} parent=0 // loop_header
    %s11 = sphi 0, %s15
    %p12 = scmp.ge.s32.totalorder %s11, 4
    %s21 = sphi 0, %s23
    %s24 = sphi 0, %s21
    %s25 = sphi 0, %s24
    %s41 = sphi 0, %s25
    %s45 = sphi 0, %s45
    %s47 = sphi 0, %s45
    %s48 = sphi 0, %s47
    %s62 = sphi 0, %s48
    %s66 = sphi 0, %s66
    %s68 = sphi 0, %s66
    %s69 = sphi 0, %s68
    %s83 = sphi 0, %s69
    %s87 = sphi 0, %s87
    %s89 = sphi 0, %s87
    %s90 = sphi 0, %s89
    %s104 = sphi 0, %s90
    %s108 = sphi 0, %s108
    %s110 = sphi 0, %s108
    %s111 = sphi 0, %s110
    %s125 = sphi 0, %s111
    %s131 = sphi 0, %s133
    %s134 = sphi 0, %s131
    %s135 = sphi 0, %s134
    %s151 = sphi 0, %s135
  $region4: #{dueling_dqn_forward.1} parent=0 // loop_header_branch
    %14 = sbr.rel (%p12) target = $region8
  $region5: #{dueling_dqn_forward.1} parent=0 // loop_body
    %s16 = ssub.s32 %s11, 1
    %s17 = ssub.s32 %s11, 2
    %s18 = sadd.s32 %s11, 1
    %s19 = ssub.s32 %s11, %s18
    %p20 = scmp.eq.s32.totalorder %s19, 0
    %s22 = sadd.s32 %s21, 1
    %s23 = scalar_select %p20, %s21, %s22
    %p26 = pneg %p20
    %p27 = scmp.eq.s32.totalorder %s11, 1
    %p28 = por %p26, %p27
    %p29 = scmp.ne.s32.totalorder %s21, %s24
    %p30 = scmp.eq.s32.totalorder %s11, 0
    %p31 = por %p29, %p30
    %p32 = scmp.ne.s32.totalorder %s21, %s24
    %p33 = scmp.eq.s32.totalorder %s16, 1
    %p34 = por %p32, %p33
    %p35 = scmp.ne.s32.totalorder %s24, %s25
    %p36 = scmp.eq.s32.totalorder %s16, 0
    %p37 = por %p35, %p36
    %p38 = scmp.ne.s32.totalorder %s24, %s25
    %p39 = scmp.eq.s32.totalorder %s17, 1
    %p40 = por %p38, %p39
    %p42 = scmp.ne.s32.totalorder %s25, %s41
    %p43 = scmp.eq.s32.totalorder %s17, 0
    %p44 = por %p42, %p43
    %s46 = sadd.s32 %s45, 1
    %p49 = scmp.eq.s32.totalorder %s11, 1
    %p50 = scmp.ne.s32.totalorder %s45, %s47
    %p51 = scmp.eq.s32.totalorder %s11, 0
    %p52 = por %p50, %p51
    %p53 = scmp.ne.s32.totalorder %s45, %s47
    %p54 = scmp.eq.s32.totalorder %s16, 1
    %p55 = por %p53, %p54
    %p56 = scmp.ne.s32.totalorder %s47, %s48
    %p57 = scmp.eq.s32.totalorder %s16, 0
    %p58 = por %p56, %p57
    %p59 = scmp.ne.s32.totalorder %s47, %s48
    %p60 = scmp.eq.s32.totalorder %s17, 1
    %p61 = por %p59, %p60
    %p63 = scmp.ne.s32.totalorder %s48, %s62
    %p64 = scmp.eq.s32.totalorder %s17, 0
    %p65 = por %p63, %p64
    %s67 = sadd.s32 %s66, 1
    %p70 = scmp.eq.s32.totalorder %s11, 1
    %p71 = scmp.ne.s32.totalorder %s66, %s68
    %p72 = scmp.eq.s32.totalorder %s11, 0
    %p73 = por %p71, %p72
    %p74 = scmp.ne.s32.totalorder %s66, %s68
    %p75 = scmp.eq.s32.totalorder %s16, 1
    %p76 = por %p74, %p75
    %p77 = scmp.ne.s32.totalorder %s68, %s69
    %p78 = scmp.eq.s32.totalorder %s16, 0
    %p79 = por %p77, %p78
    %p80 = scmp.ne.s32.totalorder %s68, %s69
    %p81 = scmp.eq.s32.totalorder %s17, 1
    %p82 = por %p80, %p81
    %p84 = scmp.ne.s32.totalorder %s69, %s83
    %p85 = scmp.eq.s32.totalorder %s17, 0
    %p86 = por %p84, %p85
    %s88 = sadd.s32 %s87, 1
    %p91 = scmp.eq.s32.totalorder %s11, 1
    %p92 = scmp.ne.s32.totalorder %s87, %s89
    %p93 = scmp.eq.s32.totalorder %s11, 0
    %p94 = por %p92, %p93
    %p95 = scmp.ne.s32.totalorder %s87, %s89
    %p96 = scmp.eq.s32.totalorder %s16, 1
    %p97 = por %p95, %p96
    %p98 = scmp.ne.s32.totalorder %s89, %s90
    %p99 = scmp.eq.s32.totalorder %s16, 0
    %p100 = por %p98, %p99
    %p101 = scmp.ne.s32.totalorder %s89, %s90
    %p102 = scmp.eq.s32.totalorder %s17, 1
    %p103 = por %p101, %p102
    %p105 = scmp.ne.s32.totalorder %s90, %s104
    %p106 = scmp.eq.s32.totalorder %s17, 0
    %p107 = por %p105, %p106
    %s109 = sadd.s32 %s108, 1
    %p112 = scmp.eq.s32.totalorder %s11, 1
    %p113 = scmp.ne.s32.totalorder %s108, %s110
    %p114 = scmp.eq.s32.totalorder %s11, 0
    %p115 = por %p113, %p114
    %p116 = scmp.ne.s32.totalorder %s108, %s110
    %p117 = scmp.eq.s32.totalorder %s16, 1
    %p118 = por %p116, %p117
    %p119 = scmp.ne.s32.totalorder %s110, %s111
    %p120 = scmp.eq.s32.totalorder %s16, 0
    %p121 = por %p119, %p120
    %p122 = scmp.ne.s32.totalorder %s110, %s111
    %p123 = scmp.eq.s32.totalorder %s17, 1
    %p124 = por %p122, %p123
    %p126 = scmp.ne.s32.totalorder %s111, %s125
    %p127 = scmp.eq.s32.totalorder %s17, 0
    %p128 = por %p126, %p127
    %s129 = ssub.s32 %s11, %s18
    %p130 = scmp.eq.s32.totalorder %s129, 0
    %s132 = sadd.s32 %s131, 1
    %s133 = scalar_select %p130, %s131, %s132
    %p136 = pneg %p130
    %p137 = scmp.eq.s32.totalorder %s11, 1
    %p138 = por %p136, %p137
    %p139 = scmp.ne.s32.totalorder %s131, %s134
    %p140 = scmp.eq.s32.totalorder %s11, 0
    %p141 = por %p139, %p140
    %p142 = scmp.ne.s32.totalorder %s131, %s134
    %p143 = scmp.eq.s32.totalorder %s16, 1
    %p144 = por %p142, %p143
    %p145 = scmp.ne.s32.totalorder %s134, %s135
    %p146 = scmp.eq.s32.totalorder %s16, 0
    %p147 = por %p145, %p146
    %p148 = scmp.ne.s32.totalorder %s134, %s135
    %p149 = scmp.eq.s32.totalorder %s17, 1
    %p150 = por %p148, %p149
    %p152 = scmp.ne.s32.totalorder %s135, %s151
    %p153 = scmp.eq.s32.totalorder %s17, 0
    %p154 = por %p152, %p153
    %p155 = scmp.le.s32.totalorder 1, %s11
    %p156 = scmp.lt.s32.totalorder %s11, 3
    %p157 = pnand %p155, %p156
    %p158 = pneg %p157
    // Predicated region
    $region9: #{dueling_dqn_forward.1} parent=5 // pred_check
      _
    $region10: #{dueling_dqn_forward.1} parent=5 // pred_check_branch
      %160 = sbr.rel (%p157) target = $region12
    $region11: #{dueling_dqn_forward.1} parent=5 // pred_region
      %s161 = ssub.s32 %s11, 1
      // Predicated region
      $region13: #{dueling_dqn_forward.1} parent=11 // pred_check
        %p162 = pneg %p58
      $region14: #{dueling_dqn_forward.1} parent=11 // pred_check_branch
        %164 = sbr.rel (%p162) target = $region16
      $region15: #{dueling_dqn_forward.1} parent=11 // pred_region
        _
      $region16: #{dueling_dqn_forward.1} parent=11 // pred_fallthru
        _
      // Predicated region
      $region17: #{dueling_dqn_forward.1} parent=11 // pred_check
        %p165 = pneg %p79
      $region18: #{dueling_dqn_forward.1} parent=11 // pred_check_branch
        %167 = sbr.rel (%p165) target = $region20
      $region19: #{dueling_dqn_forward.1} parent=11 // pred_region
        _
      $region20: #{dueling_dqn_forward.1} parent=11 // pred_fallthru
        _
      // Predicated region
      $region21: #{dueling_dqn_forward.1} parent=11 // pred_check
        %p168 = pneg %p100
      $region22: #{dueling_dqn_forward.1} parent=11 // pred_check_branch
        %170 = sbr.rel (%p168) target = $region24
      $region23: #{dueling_dqn_forward.1} parent=11 // pred_region
        _
      $region24: #{dueling_dqn_forward.1} parent=11 // pred_fallthru
        _
      // Predicated region
      $region25: #{dueling_dqn_forward.1} parent=11 // pred_check
        %p171 = pneg %p121
      $region26: #{dueling_dqn_forward.1} parent=11 // pred_check_branch
        %173 = sbr.rel (%p171) target = $region28
      $region27: #{dueling_dqn_forward.1} parent=11 // pred_region
        _
      $region28: #{dueling_dqn_forward.1} parent=11 // pred_fallthru
        _
    $region12: #{dueling_dqn_forward.1} parent=5 // pred_fallthru
      _
    %p174 = scmp.lt.s32.totalorder %s11, 2
    // Predicated region
    $region29: #{dueling_dqn_forward.1} parent=5 // pred_check
      %p175 = pneg %p174
    $region30: #{dueling_dqn_forward.1} parent=5 // pred_check_branch
      %177 = sbr.rel (%p175) target = $region32
    $region31: #{dueling_dqn_forward.1} parent=5 // pred_region
      // Predicated region
      $region33: #{dueling_dqn_forward.1} parent=31 // pred_check
        %p178 = pneg %p31
      $region34: #{dueling_dqn_forward.1} parent=31 // pred_check_branch
        %180 = sbr.rel (%p178) target = $region36
      $region35: #{dueling_dqn_forward.1} parent=31 // pred_region
        %s181 = smul.u32 64, %s11
        %p182 = scmp.lt.s32.totalorder %s181, 127
        %s183 = scalar_select %p182, %s181, 127
        %s184 = smul.addr %s183, 2
        %s185 = smul.addr %s184, 8
        %s186 = scalar_lea.vmem %s0, %s185
        %s187 = smul.u32 64, %s11
      $region36: #{dueling_dqn_forward.1} parent=31 // pred_fallthru
        _
    $region32: #{dueling_dqn_forward.1} parent=5 // pred_fallthru
      _
    %p188 = scmp.le.s32.totalorder 1, %s11
    %p189 = scmp.lt.s32.totalorder %s11, 3
    %p190 = pnand %p188, %p189
    %p191 = pneg %p190
    // Predicated region
    $region37: #{dueling_dqn_forward.1} parent=5 // pred_check
      _
    $region38: #{dueling_dqn_forward.1} parent=5 // pred_check_branch
      %193 = sbr.rel (%p190) target = $region40
    $region39: #{dueling_dqn_forward.1} parent=5 // pred_region
      %s194 = ssub.s32 %s11, 1
      %s195 = smul.u32 64, %s16
      %p196 = scmp.lt.s32.totalorder %s195, 127
      %s197 = scalar_select %p196, %s195, 127
      %s198 = smul.addr %s197, 2
      %s199 = smul.addr %s198, 8
      %s200 = scalar_lea.vmem %s0, %s199
      %p201 = pneg %p37
      %p202 = pneg %p34
      %p203 = pneg %p58
      %p204 = pneg %p55
      %p205 = pneg %p79
      %p206 = pneg %p76
      %p207 = pneg %p100
      %p208 = pneg %p97
      %p209 = pneg %p121
      %p210 = pneg %p118
      %p211 = pneg %p147
      %p212 = pneg %p144
      %p213 = scmp.lt.s32.totalorder %s16, 1
      %s214 = scalar_select %p213, %s16, 1
      %s215 = smul.addr %s214, 8
      %s216 = scalar_lea.vmem %s5, %s215
      %s217 = smul.u32 64, %s16
      %p218 = scmp.lt.s32.totalorder %s217, 127
      %s219 = scalar_select %p218, %s217, 127
      %s220 = smul.addr %s219, 2
      %s221 = smul.addr %s220, 8
      %s222 = scalar_lea.vmem %s0, %s221
      %s223 = smul.u32 64, %s16
      %p224 = scmp.lt.s32.totalorder %s16, 1
      %s225 = scalar_select %p224, %s16, 1
      %s226 = smul.addr %s225, 8
      %s227 = scalar_lea.vmem %s5, %s226
      %v228 = vld [vmem:[%s222] sm:$0xff]
      %v229 = vld [vmem:[%s222 + $0x8] sm:$0xff]
      %v230 = vld [vmem:[%s222 + $0x10] sm:$0xff]
      %v231 = vld [vmem:[%s222 + $0x18] sm:$0xff]
      %v232 = vld [vmem:[%s222 + $0x20] sm:$0xff]
      %v233 = vld [vmem:[%s222 + $0x28] sm:$0xff]
      %v234 = vld [vmem:[%s222 + $0x30] sm:$0xff]
      %v235 = vld [vmem:[%s222 + $0x38] sm:$0xff]
      %v236 = vld [vmem:[%s222 + $0x40] sm:$0xff]
      %v237 = vld [vmem:[%s222 + $0x48] sm:$0xff]
      %v238 = vld [vmem:[%s222 + $0x50] sm:$0xff]
      %v239 = vld [vmem:[%s222 + $0x58] sm:$0xff]
      %v240 = vld [vmem:[%s222 + $0x60] sm:$0xff]
      %v241 = vld [vmem:[%s222 + $0x68] sm:$0xff]
      %v242 = vld [vmem:[%s222 + $0x70] sm:$0xff]
      %v243 = vld [vmem:[%s222 + $0x78] sm:$0xff]
      %v244 = vld [vmem:[%s222 + $0x80] sm:$0xff]
      %v245 = vld [vmem:[%s222 + $0x88] sm:$0xff]
      %v246 = vld [vmem:[%s222 + $0x90] sm:$0xff]
      %v247 = vld [vmem:[%s222 + $0x98] sm:$0xff]
      %v248 = vld [vmem:[%s222 + $0xa0] sm:$0xff]
      %v249 = vld [vmem:[%s222 + $0xa8] sm:$0xff]
      %v250 = vld [vmem:[%s222 + $0xb0] sm:$0xff]
      %v251 = vld [vmem:[%s222 + $0xb8] sm:$0xff]
      %v252 = vld [vmem:[%s222 + $0xc0] sm:$0xff]
      %v253 = vld [vmem:[%s222 + $0xc8] sm:$0xff]
      %v254 = vld [vmem:[%s222 + $0xd0] sm:$0xff]
      %v255 = vld [vmem:[%s222 + $0xd8] sm:$0xff]
      %v256 = vld [vmem:[%s222 + $0xe0] sm:$0xff]
      %v257 = vld [vmem:[%s222 + $0xe8] sm:$0xff]
      %v258 = vld [vmem:[%s222 + $0xf0] sm:$0xff]
      %v259 = vld [vmem:[%s222 + $0xf8] sm:$0xff]
      %v260 = vld [vmem:[%s222 + $0x100] sm:$0xff]
      %v261 = vld [vmem:[%s222 + $0x108] sm:$0xff]
      %v262 = vld [vmem:[%s222 + $0x110] sm:$0xff]
      %v263 = vld [vmem:[%s222 + $0x118] sm:$0xff]
      %v264 = vld [vmem:[%s222 + $0x120] sm:$0xff]
      %v265 = vld [vmem:[%s222 + $0x128] sm:$0xff]
      %v266 = vld [vmem:[%s222 + $0x130] sm:$0xff]
      %v267 = vld [vmem:[%s222 + $0x138] sm:$0xff]
      %v268 = vld [vmem:[%s222 + $0x140] sm:$0xff]
      %v269 = vld [vmem:[%s222 + $0x148] sm:$0xff]
      %v270 = vld [vmem:[%s222 + $0x150] sm:$0xff]
      %v271 = vld [vmem:[%s222 + $0x158] sm:$0xff]
      %v272 = vld [vmem:[%s222 + $0x160] sm:$0xff]
      %v273 = vld [vmem:[%s222 + $0x168] sm:$0xff]
      %v274 = vld [vmem:[%s222 + $0x170] sm:$0xff]
      %v275 = vld [vmem:[%s222 + $0x178] sm:$0xff]
      %v276 = vld [vmem:[%s222 + $0x180] sm:$0xff]
      %v277 = vld [vmem:[%s222 + $0x188] sm:$0xff]
      %v278 = vld [vmem:[%s222 + $0x190] sm:$0xff]
      %v279 = vld [vmem:[%s222 + $0x198] sm:$0xff]
      %v280 = vld [vmem:[%s222 + $0x1a0] sm:$0xff]
      %v281 = vld [vmem:[%s222 + $0x1a8] sm:$0xff]
      %v282 = vld [vmem:[%s222 + $0x1b0] sm:$0xff]
      %v283 = vld [vmem:[%s222 + $0x1b8] sm:$0xff]
      %v284 = vld [vmem:[%s222 + $0x1c0] sm:$0xff]
      %v285 = vld [vmem:[%s222 + $0x1c8] sm:$0xff]
      %v286 = vld [vmem:[%s222 + $0x1d0] sm:$0xff]
      %v287 = vld [vmem:[%s222 + $0x1d8] sm:$0xff]
      %v288 = vld [vmem:[%s222 + $0x1e0] sm:$0xff]
      %v289 = vld [vmem:[%s222 + $0x1e8] sm:$0xff]
      %v290 = vld [vmem:[%s222 + $0x1f0] sm:$0xff]
      %v291 = vld [vmem:[%s222 + $0x1f8] sm:$0xff]
      %v292 = vld [vmem:[%s222 + $0x200] sm:$0xff]
      %v293 = vld [vmem:[%s222 + $0x208] sm:$0xff]
      %v294 = vld [vmem:[%s222 + $0x210] sm:$0xff]
      %v295 = vld [vmem:[%s222 + $0x218] sm:$0xff]
      %v296 = vld [vmem:[%s222 + $0x220] sm:$0xff]
      %v297 = vld [vmem:[%s222 + $0x228] sm:$0xff]
      %v298 = vld [vmem:[%s222 + $0x230] sm:$0xff]
      %v299 = vld [vmem:[%s222 + $0x238] sm:$0xff]
      %v300 = vld [vmem:[%s222 + $0x240] sm:$0xff]
      %v301 = vld [vmem:[%s222 + $0x248] sm:$0xff]
      %v302 = vld [vmem:[%s222 + $0x250] sm:$0xff]
      %v303 = vld [vmem:[%s222 + $0x258] sm:$0xff]
      %v304 = vld [vmem:[%s222 + $0x260] sm:$0xff]
      %v305 = vld [vmem:[%s222 + $0x268] sm:$0xff]
      %v306 = vld [vmem:[%s222 + $0x270] sm:$0xff]
      %v307 = vld [vmem:[%s222 + $0x278] sm:$0xff]
      %v308 = vld [vmem:[%s222 + $0x280] sm:$0xff]
      %v309 = vld [vmem:[%s222 + $0x288] sm:$0xff]
      %v310 = vld [vmem:[%s222 + $0x290] sm:$0xff]
      %v311 = vld [vmem:[%s222 + $0x298] sm:$0xff]
      %v312 = vld [vmem:[%s222 + $0x2a0] sm:$0xff]
      %v313 = vld [vmem:[%s222 + $0x2a8] sm:$0xff]
      %v314 = vld [vmem:[%s222 + $0x2b0] sm:$0xff]
      %v315 = vld [vmem:[%s222 + $0x2b8] sm:$0xff]
      %v316 = vld [vmem:[%s222 + $0x2c0] sm:$0xff]
      %v317 = vld [vmem:[%s222 + $0x2c8] sm:$0xff]
      %v318 = vld [vmem:[%s222 + $0x2d0] sm:$0xff]
      %v319 = vld [vmem:[%s222 + $0x2d8] sm:$0xff]
      %v320 = vld [vmem:[%s222 + $0x2e0] sm:$0xff]
      %v321 = vld [vmem:[%s222 + $0x2e8] sm:$0xff]
      %v322 = vld [vmem:[%s222 + $0x2f0] sm:$0xff]
      %v323 = vld [vmem:[%s222 + $0x2f8] sm:$0xff]
      %v324 = vld [vmem:[%s222 + $0x300] sm:$0xff]
      %v325 = vld [vmem:[%s222 + $0x308] sm:$0xff]
      %v326 = vld [vmem:[%s222 + $0x310] sm:$0xff]
      %v327 = vld [vmem:[%s222 + $0x318] sm:$0xff]
      %v328 = vld [vmem:[%s222 + $0x320] sm:$0xff]
      %v329 = vld [vmem:[%s222 + $0x328] sm:$0xff]
      %v330 = vld [vmem:[%s222 + $0x330] sm:$0xff]
      %v331 = vld [vmem:[%s222 + $0x338] sm:$0xff]
      %v332 = vld [vmem:[%s222 + $0x340] sm:$0xff]
      %v333 = vld [vmem:[%s222 + $0x348] sm:$0xff]
      %v334 = vld [vmem:[%s222 + $0x350] sm:$0xff]
      %v335 = vld [vmem:[%s222 + $0x358] sm:$0xff]
      %v336 = vld [vmem:[%s222 + $0x360] sm:$0xff]
      %v337 = vld [vmem:[%s222 + $0x368] sm:$0xff]
      %v338 = vld [vmem:[%s222 + $0x370] sm:$0xff]
      %v339 = vld [vmem:[%s222 + $0x378] sm:$0xff]
      %v340 = vld [vmem:[%s222 + $0x380] sm:$0xff]
      %v341 = vld [vmem:[%s222 + $0x388] sm:$0xff]
      %v342 = vld [vmem:[%s222 + $0x390] sm:$0xff]
      %v343 = vld [vmem:[%s222 + $0x398] sm:$0xff]
      %v344 = vld [vmem:[%s222 + $0x3a0] sm:$0xff]
      %v345 = vld [vmem:[%s222 + $0x3a8] sm:$0xff]
      %v346 = vld [vmem:[%s222 + $0x3b0] sm:$0xff]
      %v347 = vld [vmem:[%s222 + $0x3b8] sm:$0xff]
      %v348 = vld [vmem:[%s222 + $0x3c0] sm:$0xff]
      %v349 = vld [vmem:[%s222 + $0x3c8] sm:$0xff]
      %v350 = vld [vmem:[%s222 + $0x3d0] sm:$0xff]
      %v351 = vld [vmem:[%s222 + $0x3d8] sm:$0xff]
      %v352 = vld [vmem:[%s222 + $0x3e0] sm:$0xff]
      %v353 = vld [vmem:[%s222 + $0x3e8] sm:$0xff]
      %v354 = vld [vmem:[%s222 + $0x3f0] sm:$0xff]
      %v355 = vld [vmem:[%s222 + $0x3f8] sm:$0xff]
      %v356 = vld [vmem:[%s1] sm:$0xff]
      %v357 = vld [vmem:[%s1 + $0x8] sm:$0xff]
      %v358 = vld [vmem:[%s1 + $0x10] sm:$0xff]
      %v359 = vld [vmem:[%s1 + $0x18] sm:$0xff]
      %v360 = vld [vmem:[%s1 + $0x20] sm:$0xff]
      %v361 = vld [vmem:[%s1 + $0x28] sm:$0xff]
      %v362 = vld [vmem:[%s1 + $0x30] sm:$0xff]
      %v363 = vld [vmem:[%s1 + $0x38] sm:$0xff]
      %v364 = vld [vmem:[%s4] sm:$0x1]
      %v366 = vperm.slane %v364, 0
      %368 = vmatpush.xpose.msra.mxu0 0.0
      %369 = vmatpush.xpose.msra.mxu0 0.0
      %370 = vmatpush.xpose.msra.mxu0 0.0
      %371 = vmatpush.xpose.msra.mxu0 0.0
      %372 = vmatpush.xpose.msra.mxu0 0.0
      %373 = vmatpush.xpose.msra.mxu0 0.0
      %374 = vmatpush.xpose.msra.mxu0 0.0
      %375 = vmatpush.xpose.msra.mxu0 0.0
      %376 = vmatpush.xpose.msra.mxu0 0.0
      %377 = vmatpush.xpose.msra.mxu0 0.0
      %378 = vmatpush.xpose.msra.mxu0 0.0
      %379 = vmatpush.xpose.msra.mxu0 0.0
      %380 = vmatpush.xpose.msra.mxu0 %v362
      %381 = vmatpush.xpose.msra.mxu0 %v360
      %382 = vmatpush.xpose.msra.mxu0 %v358
      %383 = vmatpush.xpose.msra.mxu0 %v356
      %384 = vmatmul.f32.gmra.mxu0 %v228
      %v385 = vpop.f32.mrf.mxu0
      %v386 = vadd.f32 %v366, %v385
      %387 = vmatmul.f32.gmra.mxu0 %v230
      %v388 = vpop.f32.mrf.mxu0
      %v389 = vadd.f32 %v366, %v388
      %390 = vmatmul.f32.gmra.mxu0 %v232
      %v391 = vpop.f32.mrf.mxu0
      %v392 = vadd.f32 %v366, %v391
      %393 = vmatmul.f32.gmra.mxu0 %v234
      %v394 = vpop.f32.mrf.mxu0
      %v395 = vadd.f32 %v366, %v394
      %396 = vmatmul.f32.gmra.mxu0 %v236
      %v397 = vpop.f32.mrf.mxu0
      %v398 = vadd.f32 %v366, %v397
      %399 = vmatmul.f32.gmra.mxu0 %v238
      %v400 = vpop.f32.mrf.mxu0
      %v401 = vadd.f32 %v366, %v400
      %402 = vmatmul.f32.gmra.mxu0 %v240
      %v403 = vpop.f32.mrf.mxu0
      %v404 = vadd.f32 %v366, %v403
      %405 = vmatmul.f32.gmra.mxu0 %v242
      %v406 = vpop.f32.mrf.mxu0
      %v407 = vadd.f32 %v366, %v406
      %408 = vmatmul.f32.gmra.mxu0 %v244
      %v409 = vpop.f32.mrf.mxu0
      %v410 = vadd.f32 %v366, %v409
      %411 = vmatmul.f32.gmra.mxu0 %v246
      %v412 = vpop.f32.mrf.mxu0
      %v413 = vadd.f32 %v366, %v412
      %414 = vmatmul.f32.gmra.mxu0 %v248
      %v415 = vpop.f32.mrf.mxu0
      %v416 = vadd.f32 %v366, %v415
      %417 = vmatmul.f32.gmra.mxu0 %v250
      %v418 = vpop.f32.mrf.mxu0
      %v419 = vadd.f32 %v366, %v418
      %420 = vmatmul.f32.gmra.mxu0 %v252
      %v421 = vpop.f32.mrf.mxu0
      %v422 = vadd.f32 %v366, %v421
      %423 = vmatmul.f32.gmra.mxu0 %v254
      %v424 = vpop.f32.mrf.mxu0
      %v425 = vadd.f32 %v366, %v424
      %426 = vmatmul.f32.gmra.mxu0 %v256
      %v427 = vpop.f32.mrf.mxu0
      %v428 = vadd.f32 %v366, %v427
      %429 = vmatmul.f32.gmra.mxu0 %v258
      %v430 = vpop.f32.mrf.mxu0
      %v431 = vadd.f32 %v366, %v430
      %432 = vmatmul.f32.gmra.mxu0 %v260
      %v433 = vpop.f32.mrf.mxu0
      %v434 = vadd.f32 %v366, %v433
      %435 = vmatmul.f32.gmra.mxu0 %v262
      %v436 = vpop.f32.mrf.mxu0
      %v437 = vadd.f32 %v366, %v436
      %438 = vmatmul.f32.gmra.mxu0 %v264
      %v439 = vpop.f32.mrf.mxu0
      %v440 = vadd.f32 %v366, %v439
      %441 = vmatmul.f32.gmra.mxu0 %v266
      %v442 = vpop.f32.mrf.mxu0
      %v443 = vadd.f32 %v366, %v442
      %444 = vmatmul.f32.gmra.mxu0 %v268
      %v445 = vpop.f32.mrf.mxu0
      %v446 = vadd.f32 %v366, %v445
      %447 = vmatmul.f32.gmra.mxu0 %v270
      %v448 = vpop.f32.mrf.mxu0
      %v449 = vadd.f32 %v366, %v448
      %450 = vmatmul.f32.gmra.mxu0 %v272
      %v451 = vpop.f32.mrf.mxu0
      %v452 = vadd.f32 %v366, %v451
      %453 = vmatmul.f32.gmra.mxu0 %v274
      %v454 = vpop.f32.mrf.mxu0
      %v455 = vadd.f32 %v366, %v454
      %456 = vmatmul.f32.gmra.mxu0 %v276
      %v457 = vpop.f32.mrf.mxu0
      %v458 = vadd.f32 %v366, %v457
      %459 = vmatmul.f32.gmra.mxu0 %v278
      %v460 = vpop.f32.mrf.mxu0
      %v461 = vadd.f32 %v366, %v460
      %462 = vmatmul.f32.gmra.mxu0 %v280
      %v463 = vpop.f32.mrf.mxu0
      %v464 = vadd.f32 %v366, %v463
      %465 = vmatmul.f32.gmra.mxu0 %v282
      %v466 = vpop.f32.mrf.mxu0
      %v467 = vadd.f32 %v366, %v466
      %468 = vmatmul.f32.gmra.mxu0 %v284
      %v469 = vpop.f32.mrf.mxu0
      %v470 = vadd.f32 %v366, %v469
      %471 = vmatmul.f32.gmra.mxu0 %v286
      %v472 = vpop.f32.mrf.mxu0
      %v473 = vadd.f32 %v366, %v472
      %474 = vmatmul.f32.gmra.mxu0 %v288
      %v475 = vpop.f32.mrf.mxu0
      %v476 = vadd.f32 %v366, %v475
      %477 = vmatmul.f32.gmra.mxu0 %v290
      %v478 = vpop.f32.mrf.mxu0
      %v479 = vadd.f32 %v366, %v478
      %480 = vmatmul.f32.gmra.mxu0 %v292
      %v481 = vpop.f32.mrf.mxu0
      %v482 = vadd.f32 %v366, %v481
      %483 = vmatmul.f32.gmra.mxu0 %v294
      %v484 = vpop.f32.mrf.mxu0
      %v485 = vadd.f32 %v366, %v484
      %486 = vmatmul.f32.gmra.mxu0 %v296
      %v487 = vpop.f32.mrf.mxu0
      %v488 = vadd.f32 %v366, %v487
      %489 = vmatmul.f32.gmra.mxu0 %v298
      %v490 = vpop.f32.mrf.mxu0
      %v491 = vadd.f32 %v366, %v490
      %492 = vmatmul.f32.gmra.mxu0 %v300
      %v493 = vpop.f32.mrf.mxu0
      %v494 = vadd.f32 %v366, %v493
      %495 = vmatmul.f32.gmra.mxu0 %v302
      %v496 = vpop.f32.mrf.mxu0
      %v497 = vadd.f32 %v366, %v496
      %498 = vmatmul.f32.gmra.mxu0 %v304
      %v499 = vpop.f32.mrf.mxu0
      %v500 = vadd.f32 %v366, %v499
      %501 = vmatmul.f32.gmra.mxu0 %v306
      %v502 = vpop.f32.mrf.mxu0
      %v503 = vadd.f32 %v366, %v502
      %504 = vmatmul.f32.gmra.mxu0 %v308
      %v505 = vpop.f32.mrf.mxu0
      %v506 = vadd.f32 %v366, %v505
      %507 = vmatmul.f32.gmra.mxu0 %v310
      %v508 = vpop.f32.mrf.mxu0
      %v509 = vadd.f32 %v366, %v508
      %510 = vmatmul.f32.gmra.mxu0 %v312
      %v511 = vpop.f32.mrf.mxu0
      %v512 = vadd.f32 %v366, %v511
      %513 = vmatmul.f32.gmra.mxu0 %v314
      %v514 = vpop.f32.mrf.mxu0
      %v515 = vadd.f32 %v366, %v514
      %516 = vmatmul.f32.gmra.mxu0 %v316
      %v517 = vpop.f32.mrf.mxu0
      %v518 = vadd.f32 %v366, %v517
      %519 = vmatmul.f32.gmra.mxu0 %v318
      %v520 = vpop.f32.mrf.mxu0
      %v521 = vadd.f32 %v366, %v520
      %522 = vmatmul.f32.gmra.mxu0 %v320
      %v523 = vpop.f32.mrf.mxu0
      %v524 = vadd.f32 %v366, %v523
      %525 = vmatmul.f32.gmra.mxu0 %v322
      %v526 = vpop.f32.mrf.mxu0
      %v527 = vadd.f32 %v366, %v526
      %528 = vmatmul.f32.gmra.mxu0 %v324
      %v529 = vpop.f32.mrf.mxu0
      %v530 = vadd.f32 %v366, %v529
      %531 = vmatmul.f32.gmra.mxu0 %v326
      %v532 = vpop.f32.mrf.mxu0
      %v533 = vadd.f32 %v366, %v532
      %534 = vmatmul.f32.gmra.mxu0 %v328
      %v535 = vpop.f32.mrf.mxu0
      %v536 = vadd.f32 %v366, %v535
      %537 = vmatmul.f32.gmra.mxu0 %v330
      %v538 = vpop.f32.mrf.mxu0
      %v539 = vadd.f32 %v366, %v538
      %540 = vmatmul.f32.gmra.mxu0 %v332
      %v541 = vpop.f32.mrf.mxu0
      %v542 = vadd.f32 %v366, %v541
      %543 = vmatmul.f32.gmra.mxu0 %v334
      %v544 = vpop.f32.mrf.mxu0
      %v545 = vadd.f32 %v366, %v544
      %546 = vmatmul.f32.gmra.mxu0 %v336
      %v547 = vpop.f32.mrf.mxu0
      %v548 = vadd.f32 %v366, %v547
      %549 = vmatmul.f32.gmra.mxu0 %v338
      %v550 = vpop.f32.mrf.mxu0
      %v551 = vadd.f32 %v366, %v550
      %552 = vmatmul.f32.gmra.mxu0 %v340
      %v553 = vpop.f32.mrf.mxu0
      %v554 = vadd.f32 %v366, %v553
      %555 = vmatmul.f32.gmra.mxu0 %v342
      %v556 = vpop.f32.mrf.mxu0
      %v557 = vadd.f32 %v366, %v556
      %558 = vmatmul.f32.gmra.mxu0 %v344
      %v559 = vpop.f32.mrf.mxu0
      %v560 = vadd.f32 %v366, %v559
      %561 = vmatmul.f32.gmra.mxu0 %v346
      %v562 = vpop.f32.mrf.mxu0
      %v563 = vadd.f32 %v366, %v562
      %564 = vmatmul.f32.gmra.mxu0 %v348
      %v565 = vpop.f32.mrf.mxu0
      %v566 = vadd.f32 %v366, %v565
      %567 = vmatmul.f32.gmra.mxu0 %v350
      %v568 = vpop.f32.mrf.mxu0
      %v569 = vadd.f32 %v366, %v568
      %570 = vmatmul.f32.gmra.mxu0 %v352
      %v571 = vpop.f32.mrf.mxu0
      %v572 = vadd.f32 %v366, %v571
      %573 = vmatmul.f32.gmra.mxu0 %v354
      %v574 = vpop.f32.mrf.mxu0
      %v575 = vadd.f32 %v366, %v574
      %576 = vdwg.mxu0
      %577 = vmatpush.xpose.msra.mxu0 0.0
      %578 = vmatpush.xpose.msra.mxu0 0.0
      %579 = vmatpush.xpose.msra.mxu0 0.0
      %580 = vmatpush.xpose.msra.mxu0 0.0
      %581 = vmatpush.xpose.msra.mxu0 0.0
      %582 = vmatpush.xpose.msra.mxu0 0.0
      %583 = vmatpush.xpose.msra.mxu0 0.0
      %584 = vmatpush.xpose.msra.mxu0 0.0
      %585 = vmatpush.xpose.msra.mxu0 0.0
      %586 = vmatpush.xpose.msra.mxu0 0.0
      %587 = vmatpush.xpose.msra.mxu0 0.0
      %588 = vmatpush.xpose.msra.mxu0 0.0
      %589 = vmatpush.xpose.msra.mxu0 %v363
      %590 = vmatpush.xpose.msra.mxu0 %v361
      %591 = vmatpush.xpose.msra.mxu0 %v359
      %592 = vmatpush.xpose.msra.mxu0 %v357
      %593 = vmatmul.f32.gmra.mxu0 %v229
      %v594 = vpop.f32.mrf.mxu0
      %v595 = vadd.f32 %v386, %v594
      %596 = vmatmul.f32.gmra.mxu0 %v231
      %v597 = vpop.f32.mrf.mxu0
      %v598 = vadd.f32 %v389, %v597
      %599 = vmatmul.f32.gmra.mxu0 %v233
      %v600 = vpop.f32.mrf.mxu0
      %v601 = vadd.f32 %v392, %v600
      %602 = vmatmul.f32.gmra.mxu0 %v235
      %v603 = vpop.f32.mrf.mxu0
      %v604 = vadd.f32 %v395, %v603
      %605 = vmatmul.f32.gmra.mxu0 %v237
      %v606 = vpop.f32.mrf.mxu0
      %v607 = vadd.f32 %v398, %v606
      %608 = vmatmul.f32.gmra.mxu0 %v239
      %v609 = vpop.f32.mrf.mxu0
      %v610 = vadd.f32 %v401, %v609
      %611 = vmatmul.f32.gmra.mxu0 %v241
      %v612 = vpop.f32.mrf.mxu0
      %v613 = vadd.f32 %v404, %v612
      %614 = vmatmul.f32.gmra.mxu0 %v243
      %v615 = vpop.f32.mrf.mxu0
      %v616 = vadd.f32 %v407, %v615
      %617 = vmatmul.f32.gmra.mxu0 %v245
      %v618 = vpop.f32.mrf.mxu0
      %v619 = vadd.f32 %v410, %v618
      %620 = vmatmul.f32.gmra.mxu0 %v247
      %v621 = vpop.f32.mrf.mxu0
      %v622 = vadd.f32 %v413, %v621
      %623 = vmatmul.f32.gmra.mxu0 %v249
      %v624 = vpop.f32.mrf.mxu0
      %v625 = vadd.f32 %v416, %v624
      %626 = vmatmul.f32.gmra.mxu0 %v251
      %v627 = vpop.f32.mrf.mxu0
      %v628 = vadd.f32 %v419, %v627
      %629 = vmatmul.f32.gmra.mxu0 %v253
      %v630 = vpop.f32.mrf.mxu0
      %v631 = vadd.f32 %v422, %v630
      %632 = vmatmul.f32.gmra.mxu0 %v255
      %v633 = vpop.f32.mrf.mxu0
      %v634 = vadd.f32 %v425, %v633
      %635 = vmatmul.f32.gmra.mxu0 %v257
      %v636 = vpop.f32.mrf.mxu0
      %v637 = vadd.f32 %v428, %v636
      %638 = vmatmul.f32.gmra.mxu0 %v259
      %v639 = vpop.f32.mrf.mxu0
      %v640 = vadd.f32 %v431, %v639
      %641 = vmatmul.f32.gmra.mxu0 %v261
      %v642 = vpop.f32.mrf.mxu0
      %v643 = vadd.f32 %v434, %v642
      %644 = vmatmul.f32.gmra.mxu0 %v263
      %v645 = vpop.f32.mrf.mxu0
      %v646 = vadd.f32 %v437, %v645
      %647 = vmatmul.f32.gmra.mxu0 %v265
      %v648 = vpop.f32.mrf.mxu0
      %v649 = vadd.f32 %v440, %v648
      %650 = vmatmul.f32.gmra.mxu0 %v267
      %v651 = vpop.f32.mrf.mxu0
      %v652 = vadd.f32 %v443, %v651
      %653 = vmatmul.f32.gmra.mxu0 %v269
      %v654 = vpop.f32.mrf.mxu0
      %v655 = vadd.f32 %v446, %v654
      %656 = vmatmul.f32.gmra.mxu0 %v271
      %v657 = vpop.f32.mrf.mxu0
      %v658 = vadd.f32 %v449, %v657
      %659 = vmatmul.f32.gmra.mxu0 %v273
      %v660 = vpop.f32.mrf.mxu0
      %v661 = vadd.f32 %v452, %v660
      %662 = vmatmul.f32.gmra.mxu0 %v275
      %v663 = vpop.f32.mrf.mxu0
      %v664 = vadd.f32 %v455, %v663
      %665 = vmatmul.f32.gmra.mxu0 %v277
      %v666 = vpop.f32.mrf.mxu0
      %v667 = vadd.f32 %v458, %v666
      %668 = vmatmul.f32.gmra.mxu0 %v279
      %v669 = vpop.f32.mrf.mxu0
      %v670 = vadd.f32 %v461, %v669
      %671 = vmatmul.f32.gmra.mxu0 %v281
      %v672 = vpop.f32.mrf.mxu0
      %v673 = vadd.f32 %v464, %v672
      %674 = vmatmul.f32.gmra.mxu0 %v283
      %v675 = vpop.f32.mrf.mxu0
      %v676 = vadd.f32 %v467, %v675
      %677 = vmatmul.f32.gmra.mxu0 %v285
      %v678 = vpop.f32.mrf.mxu0
      %v679 = vadd.f32 %v470, %v678
      %680 = vmatmul.f32.gmra.mxu0 %v287
      %v681 = vpop.f32.mrf.mxu0
      %v682 = vadd.f32 %v473, %v681
      %683 = vmatmul.f32.gmra.mxu0 %v289
      %v684 = vpop.f32.mrf.mxu0
      %v685 = vadd.f32 %v476, %v684
      %686 = vmatmul.f32.gmra.mxu0 %v291
      %v687 = vpop.f32.mrf.mxu0
      %v688 = vadd.f32 %v479, %v687
      %689 = vmatmul.f32.gmra.mxu0 %v293
      %v690 = vpop.f32.mrf.mxu0
      %v691 = vadd.f32 %v482, %v690
      %692 = vmatmul.f32.gmra.mxu0 %v295
      %v693 = vpop.f32.mrf.mxu0
      %v694 = vadd.f32 %v485, %v693
      %695 = vmatmul.f32.gmra.mxu0 %v297
      %v696 = vpop.f32.mrf.mxu0
      %v697 = vadd.f32 %v488, %v696
      %698 = vmatmul.f32.gmra.mxu0 %v299
      %v699 = vpop.f32.mrf.mxu0
      %v700 = vadd.f32 %v491, %v699
      %701 = vmatmul.f32.gmra.mxu0 %v301
      %v702 = vpop.f32.mrf.mxu0
      %v703 = vadd.f32 %v494, %v702
      %704 = vmatmul.f32.gmra.mxu0 %v303
      %v705 = vpop.f32.mrf.mxu0
      %v706 = vadd.f32 %v497, %v705
      %707 = vmatmul.f32.gmra.mxu0 %v305
      %v708 = vpop.f32.mrf.mxu0
      %v709 = vadd.f32 %v500, %v708
      %710 = vmatmul.f32.gmra.mxu0 %v307
      %v711 = vpop.f32.mrf.mxu0
      %v712 = vadd.f32 %v503, %v711
      %713 = vmatmul.f32.gmra.mxu0 %v309
      %v714 = vpop.f32.mrf.mxu0
      %v715 = vadd.f32 %v506, %v714
      %716 = vmatmul.f32.gmra.mxu0 %v311
      %v717 = vpop.f32.mrf.mxu0
      %v718 = vadd.f32 %v509, %v717
      %719 = vmatmul.f32.gmra.mxu0 %v313
      %v720 = vpop.f32.mrf.mxu0
      %v721 = vadd.f32 %v512, %v720
      %722 = vmatmul.f32.gmra.mxu0 %v315
      %v723 = vpop.f32.mrf.mxu0
      %v724 = vadd.f32 %v515, %v723
      %725 = vmatmul.f32.gmra.mxu0 %v317
      %v726 = vpop.f32.mrf.mxu0
      %v727 = vadd.f32 %v518, %v726
      %728 = vmatmul.f32.gmra.mxu0 %v319
      %v729 = vpop.f32.mrf.mxu0
      %v730 = vadd.f32 %v521, %v729
      %731 = vmatmul.f32.gmra.mxu0 %v321
      %v732 = vpop.f32.mrf.mxu0
      %v733 = vadd.f32 %v524, %v732
      %734 = vmatmul.f32.gmra.mxu0 %v323
      %v735 = vpop.f32.mrf.mxu0
      %v736 = vadd.f32 %v527, %v735
      %737 = vmatmul.f32.gmra.mxu0 %v325
      %v738 = vpop.f32.mrf.mxu0
      %v739 = vadd.f32 %v530, %v738
      %740 = vmatmul.f32.gmra.mxu0 %v327
      %v741 = vpop.f32.mrf.mxu0
      %v742 = vadd.f32 %v533, %v741
      %743 = vmatmul.f32.gmra.mxu0 %v329
      %v744 = vpop.f32.mrf.mxu0
      %v745 = vadd.f32 %v536, %v744
      %746 = vmatmul.f32.gmra.mxu0 %v331
      %v747 = vpop.f32.mrf.mxu0
      %v748 = vadd.f32 %v539, %v747
      %749 = vmatmul.f32.gmra.mxu0 %v333
      %v750 = vpop.f32.mrf.mxu0
      %v751 = vadd.f32 %v542, %v750
      %752 = vmatmul.f32.gmra.mxu0 %v335
      %v753 = vpop.f32.mrf.mxu0
      %v754 = vadd.f32 %v545, %v753
      %755 = vmatmul.f32.gmra.mxu0 %v337
      %v756 = vpop.f32.mrf.mxu0
      %v757 = vadd.f32 %v548, %v756
      %758 = vmatmul.f32.gmra.mxu0 %v339
      %v759 = vpop.f32.mrf.mxu0
      %v760 = vadd.f32 %v551, %v759
      %761 = vmatmul.f32.gmra.mxu0 %v341
      %v762 = vpop.f32.mrf.mxu0
      %v763 = vadd.f32 %v554, %v762
      %764 = vmatmul.f32.gmra.mxu0 %v343
      %v765 = vpop.f32.mrf.mxu0
      %v766 = vadd.f32 %v557, %v765
      %767 = vmatmul.f32.gmra.mxu0 %v345
      %v768 = vpop.f32.mrf.mxu0
      %v769 = vadd.f32 %v560, %v768
      %770 = vmatmul.f32.gmra.mxu0 %v347
      %v771 = vpop.f32.mrf.mxu0
      %v772 = vadd.f32 %v563, %v771
      %773 = vmatmul.f32.gmra.mxu0 %v349
      %v774 = vpop.f32.mrf.mxu0
      %v775 = vadd.f32 %v566, %v774
      %776 = vmatmul.f32.gmra.mxu0 %v351
      %v777 = vpop.f32.mrf.mxu0
      %v778 = vadd.f32 %v569, %v777
      %779 = vmatmul.f32.gmra.mxu0 %v353
      %v780 = vpop.f32.mrf.mxu0
      %v781 = vadd.f32 %v572, %v780
      %782 = vmatmul.f32.gmra.mxu0 %v355
      %v783 = vpop.f32.mrf.mxu0
      %v784 = vadd.f32 %v575, %v783
      %785 = vdwg.mxu0
      %v786 = vmax.f32 %v595, 0.0
      %v787 = vmax.f32 %v598, 0.0
      %v788 = vmax.f32 %v601, 0.0
      %v789 = vmax.f32 %v604, 0.0
      %v790 = vmax.f32 %v607, 0.0
      %v791 = vmax.f32 %v610, 0.0
      %v792 = vmax.f32 %v613, 0.0
      %v793 = vmax.f32 %v616, 0.0
      %v794 = vmax.f32 %v619, 0.0
      %v795 = vmax.f32 %v622, 0.0
      %v796 = vmax.f32 %v625, 0.0
      %v797 = vmax.f32 %v628, 0.0
      %v798 = vmax.f32 %v631, 0.0
      %v799 = vmax.f32 %v634, 0.0
      %v800 = vmax.f32 %v637, 0.0
      %v801 = vmax.f32 %v640, 0.0
      %v802 = vmax.f32 %v643, 0.0
      %v803 = vmax.f32 %v646, 0.0
      %v804 = vmax.f32 %v649, 0.0
      %v805 = vmax.f32 %v652, 0.0
      %v806 = vmax.f32 %v655, 0.0
      %v807 = vmax.f32 %v658, 0.0
      %v808 = vmax.f32 %v661, 0.0
      %v809 = vmax.f32 %v664, 0.0
      %v810 = vmax.f32 %v667, 0.0
      %v811 = vmax.f32 %v670, 0.0
      %v812 = vmax.f32 %v673, 0.0
      %v813 = vmax.f32 %v676, 0.0
      %v814 = vmax.f32 %v679, 0.0
      %v815 = vmax.f32 %v682, 0.0
      %v816 = vmax.f32 %v685, 0.0
      %v817 = vmax.f32 %v688, 0.0
      %v818 = vmax.f32 %v691, 0.0
      %v819 = vmax.f32 %v694, 0.0
      %v820 = vmax.f32 %v697, 0.0
      %v821 = vmax.f32 %v700, 0.0
      %v822 = vmax.f32 %v703, 0.0
      %v823 = vmax.f32 %v706, 0.0
      %v824 = vmax.f32 %v709, 0.0
      %v825 = vmax.f32 %v712, 0.0
      %v826 = vmax.f32 %v715, 0.0
      %v827 = vmax.f32 %v718, 0.0
      %v828 = vmax.f32 %v721, 0.0
      %v829 = vmax.f32 %v724, 0.0
      %v830 = vmax.f32 %v727, 0.0
      %v831 = vmax.f32 %v730, 0.0
      %v832 = vmax.f32 %v733, 0.0
      %v833 = vmax.f32 %v736, 0.0
      %v834 = vmax.f32 %v739, 0.0
      %v835 = vmax.f32 %v742, 0.0
      %v836 = vmax.f32 %v745, 0.0
      %v837 = vmax.f32 %v748, 0.0
      %v838 = vmax.f32 %v751, 0.0
      %v839 = vmax.f32 %v754, 0.0
      %v840 = vmax.f32 %v757, 0.0
      %v841 = vmax.f32 %v760, 0.0
      %v842 = vmax.f32 %v763, 0.0
      %v843 = vmax.f32 %v766, 0.0
      %v844 = vmax.f32 %v769, 0.0
      %v845 = vmax.f32 %v772, 0.0
      %v846 = vmax.f32 %v775, 0.0
      %v847 = vmax.f32 %v778, 0.0
      %v848 = vmax.f32 %v781, 0.0
      %v849 = vmax.f32 %v784, 0.0
      %866 = vrot.lane.b32.xlu0 %v802, 32
      %v867 = vpop.permute.xlu0 %866
      %868 = vrot.lane.b32.xlu0 %v803, 32
      %v869 = vpop.permute.xlu0 %868
      %870 = vrot.lane.b32.xlu0 %v804, 32
      %v871 = vpop.permute.xlu0 %870
      %872 = vrot.lane.b32.xlu0 %v805, 32
      %v873 = vpop.permute.xlu0 %872
      %874 = vrot.lane.b32.xlu0 %v806, 32
      %v875 = vpop.permute.xlu0 %874
      %876 = vrot.lane.b32.xlu0 %v807, 32
      %v877 = vpop.permute.xlu0 %876
      %878 = vrot.lane.b32.xlu0 %v808, 32
      %v879 = vpop.permute.xlu0 %878
      %880 = vrot.lane.b32.xlu0 %v809, 32
      %v881 = vpop.permute.xlu0 %880
      %882 = vrot.lane.b32.xlu0 %v810, 32
      %v883 = vpop.permute.xlu0 %882
      %884 = vrot.lane.b32.xlu0 %v811, 32
      %v885 = vpop.permute.xlu0 %884
      %886 = vrot.lane.b32.xlu0 %v812, 32
      %v887 = vpop.permute.xlu0 %886
      %888 = vrot.lane.b32.xlu0 %v813, 32
      %v889 = vpop.permute.xlu0 %888
      %890 = vrot.lane.b32.xlu0 %v814, 32
      %v891 = vpop.permute.xlu0 %890
      %892 = vrot.lane.b32.xlu0 %v815, 32
      %v893 = vpop.permute.xlu0 %892
      %894 = vrot.lane.b32.xlu0 %v816, 32
      %v895 = vpop.permute.xlu0 %894
      %896 = vrot.lane.b32.xlu0 %v817, 32
      %v897 = vpop.permute.xlu0 %896
      %930 = vrot.lane.b32.xlu0 %v818, 64
      %v931 = vpop.permute.xlu0 %930
      %932 = vrot.lane.b32.xlu0 %v819, 64
      %v933 = vpop.permute.xlu0 %932
      %934 = vrot.lane.b32.xlu0 %v820, 64
      %v935 = vpop.permute.xlu0 %934
      %936 = vrot.lane.b32.xlu0 %v821, 64
      %v937 = vpop.permute.xlu0 %936
      %938 = vrot.lane.b32.xlu0 %v822, 64
      %v939 = vpop.permute.xlu0 %938
      %940 = vrot.lane.b32.xlu0 %v823, 64
      %v941 = vpop.permute.xlu0 %940
      %942 = vrot.lane.b32.xlu0 %v824, 64
      %v943 = vpop.permute.xlu0 %942
      %944 = vrot.lane.b32.xlu0 %v825, 64
      %v945 = vpop.permute.xlu0 %944
      %946 = vrot.lane.b32.xlu0 %v826, 64
      %v947 = vpop.permute.xlu0 %946
      %948 = vrot.lane.b32.xlu0 %v827, 64
      %v949 = vpop.permute.xlu0 %948
      %950 = vrot.lane.b32.xlu0 %v828, 64
      %v951 = vpop.permute.xlu0 %950
      %952 = vrot.lane.b32.xlu0 %v829, 64
      %v953 = vpop.permute.xlu0 %952
      %954 = vrot.lane.b32.xlu0 %v830, 64
      %v955 = vpop.permute.xlu0 %954
      %956 = vrot.lane.b32.xlu0 %v831, 64
      %v957 = vpop.permute.xlu0 %956
      %958 = vrot.lane.b32.xlu0 %v832, 64
      %v959 = vpop.permute.xlu0 %958
      %960 = vrot.lane.b32.xlu0 %v833, 64
      %v961 = vpop.permute.xlu0 %960
      %994 = vrot.lane.b32.xlu0 %v834, 96
      %v995 = vpop.permute.xlu0 %994
      %996 = vrot.lane.b32.xlu0 %v835, 96
      %v997 = vpop.permute.xlu0 %996
      %998 = vrot.lane.b32.xlu0 %v836, 96
      %v999 = vpop.permute.xlu0 %998
      %1000 = vrot.lane.b32.xlu0 %v837, 96
      %v1001 = vpop.permute.xlu0 %1000
      %1002 = vrot.lane.b32.xlu0 %v838, 96
      %v1003 = vpop.permute.xlu0 %1002
      %1004 = vrot.lane.b32.xlu0 %v839, 96
      %v1005 = vpop.permute.xlu0 %1004
      %1006 = vrot.lane.b32.xlu0 %v840, 96
      %v1007 = vpop.permute.xlu0 %1006
      %1008 = vrot.lane.b32.xlu0 %v841, 96
      %v1009 = vpop.permute.xlu0 %1008
      %1010 = vrot.lane.b32.xlu0 %v842, 96
      %v1011 = vpop.permute.xlu0 %1010
      %1012 = vrot.lane.b32.xlu0 %v843, 96
      %v1013 = vpop.permute.xlu0 %1012
      %1014 = vrot.lane.b32.xlu0 %v844, 96
      %v1015 = vpop.permute.xlu0 %1014
      %1016 = vrot.lane.b32.xlu0 %v845, 96
      %v1017 = vpop.permute.xlu0 %1016
      %1018 = vrot.lane.b32.xlu0 %v846, 96
      %v1019 = vpop.permute.xlu0 %1018
      %1020 = vrot.lane.b32.xlu0 %v847, 96
      %v1021 = vpop.permute.xlu0 %1020
      %1022 = vrot.lane.b32.xlu0 %v848, 96
      %v1023 = vpop.permute.xlu0 %1022
      %1024 = vrot.lane.b32.xlu0 %v849, 96
      %v1025 = vpop.permute.xlu0 %1024
      %vm1042 = vcmask 261120
      %v1043 = vsel %vm1042, %v786, %v867
      %v1044 = vsel %vm1042, %v787, %v869
      %v1045 = vsel %vm1042, %v788, %v871
      %v1046 = vsel %vm1042, %v789, %v873
      %v1047 = vsel %vm1042, %v790, %v875
      %v1048 = vsel %vm1042, %v791, %v877
      %v1049 = vsel %vm1042, %v792, %v879
      %v1050 = vsel %vm1042, %v793, %v881
      %v1051 = vsel %vm1042, %v794, %v883
      %v1052 = vsel %vm1042, %v795, %v885
      %v1053 = vsel %vm1042, %v796, %v887
      %v1054 = vsel %vm1042, %v797, %v889
      %v1055 = vsel %vm1042, %v798, %v891
      %v1056 = vsel %vm1042, %v799, %v893
      %v1057 = vsel %vm1042, %v800, %v895
      %v1058 = vsel %vm1042, %v801, %v897
      %vm1059 = vcmask 523264
      %v1060 = vsel %vm1059, %v1043, %v931
      %v1061 = vsel %vm1059, %v1044, %v933
      %v1062 = vsel %vm1059, %v1045, %v935
      %v1063 = vsel %vm1059, %v1046, %v937
      %v1064 = vsel %vm1059, %v1047, %v939
      %v1065 = vsel %vm1059, %v1048, %v941
      %v1066 = vsel %vm1059, %v1049, %v943
      %v1067 = vsel %vm1059, %v1050, %v945
      %v1068 = vsel %vm1059, %v1051, %v947
      %v1069 = vsel %vm1059, %v1052, %v949
      %v1070 = vsel %vm1059, %v1053, %v951
      %v1071 = vsel %vm1059, %v1054, %v953
      %v1072 = vsel %vm1059, %v1055, %v955
      %v1073 = vsel %vm1059, %v1056, %v957
      %v1074 = vsel %vm1059, %v1057, %v959
      %v1075 = vsel %vm1059, %v1058, %v961
      %vm1076 = vcmask 785408
      %v1077 = vsel %vm1076, %v1060, %v995
      %v1078 = vsel %vm1076, %v1061, %v997
      %v1079 = vsel %vm1076, %v1062, %v999
      %v1080 = vsel %vm1076, %v1063, %v1001
      %v1081 = vsel %vm1076, %v1064, %v1003
      %v1082 = vsel %vm1076, %v1065, %v1005
      %v1083 = vsel %vm1076, %v1066, %v1007
      %v1084 = vsel %vm1076, %v1067, %v1009
      %v1085 = vsel %vm1076, %v1068, %v1011
      %v1086 = vsel %vm1076, %v1069, %v1013
      %v1087 = vsel %vm1076, %v1070, %v1015
      %v1088 = vsel %vm1076, %v1071, %v1017
      %v1089 = vsel %vm1076, %v1072, %v1019
      %v1090 = vsel %vm1076, %v1073, %v1021
      %v1091 = vsel %vm1076, %v1074, %v1023
      %v1092 = vsel %vm1076, %v1075, %v1025
      %v1093 = vld [vmem:[%s2] sm:$0xff]
      %v1094 = vld [vmem:[%s2 + $0x8] sm:$0xff]
      %v1095 = vld [vmem:[%s2 + $0x10] sm:$0xff]
      %v1096 = vld [vmem:[%s2 + $0x18] sm:$0xff]
      %v1097 = vld [vmem:[%s2 + $0x88] sm:$0xff]
      %v1098 = vld [vmem:[%s2 + $0x90] sm:$0xff]
      %v1099 = vld [vmem:[%s2 + $0x98] sm:$0xff]
      %v1100 = vld [vmem:[%s2 + $0xa0] sm:$0xff]
      %v1101 = vld [vmem:[%s2 + $0x110] sm:$0xff]
      %v1102 = vld [vmem:[%s2 + $0x118] sm:$0xff]
      %v1103 = vld [vmem:[%s2 + $0x120] sm:$0xff]
      %v1104 = vld [vmem:[%s2 + $0x128] sm:$0xff]
      %v1105 = vld [vmem:[%s2 + $0x198] sm:$0xff]
      %v1106 = vld [vmem:[%s2 + $0x1a0] sm:$0xff]
      %v1107 = vld [vmem:[%s2 + $0x1a8] sm:$0xff]
      %v1108 = vld [vmem:[%s2 + $0x1b0] sm:$0xff]
      %v1109 = vld [vmem:[%s2 + $0x220] sm:$0xff]
      %v1110 = vld [vmem:[%s2 + $0x228] sm:$0xff]
      %v1111 = vld [vmem:[%s2 + $0x230] sm:$0xff]
      %v1112 = vld [vmem:[%s2 + $0x238] sm:$0xff]
      %v1113 = vld [vmem:[%s2 + $0x2a8] sm:$0xff]
      %v1114 = vld [vmem:[%s2 + $0x2b0] sm:$0xff]
      %v1115 = vld [vmem:[%s2 + $0x2b8] sm:$0xff]
      %v1116 = vld [vmem:[%s2 + $0x2c0] sm:$0xff]
      %v1117 = vld [vmem:[%s2 + $0x330] sm:$0xff]
      %v1118 = vld [vmem:[%s2 + $0x338] sm:$0xff]
      %v1119 = vld [vmem:[%s2 + $0x340] sm:$0xff]
      %v1120 = vld [vmem:[%s2 + $0x348] sm:$0xff]
      %v1121 = vld [vmem:[%s2 + $0x3b8] sm:$0xff]
      %v1122 = vld [vmem:[%s2 + $0x3c0] sm:$0xff]
      %v1123 = vld [vmem:[%s2 + $0x3c8] sm:$0xff]
      %v1124 = vld [vmem:[%s2 + $0x3d0] sm:$0xff]
      %v1125 = vld [vmem:[%s4 + $0x1] sm:$0x1]
      %v1127 = vperm.slane %v1125, 0
      %1129 = vmatpush.xpose.msra.mxu0 0.0
      %1130 = vmatpush.xpose.msra.mxu0 0.0
      %1131 = vmatpush.xpose.msra.mxu0 0.0
      %1132 = vmatpush.xpose.msra.mxu0 0.0
      %1133 = vmatpush.xpose.msra.mxu0 0.0
      %1134 = vmatpush.xpose.msra.mxu0 0.0
      %1135 = vmatpush.xpose.msra.mxu0 0.0
      %1136 = vmatpush.xpose.msra.mxu0 0.0
      %1137 = vmatpush.xpose.msra.mxu0 %v1121
      %1138 = vmatpush.xpose.msra.mxu0 %v1117
      %1139 = vmatpush.xpose.msra.mxu0 %v1113
      %1140 = vmatpush.xpose.msra.mxu0 %v1109
      %1141 = vmatpush.xpose.msra.mxu0 %v1105
      %1142 = vmatpush.xpose.msra.mxu0 %v1101
      %1143 = vmatpush.xpose.msra.mxu0 %v1097
      %1144 = vmatpush.xpose.msra.mxu0 %v1093
      %1145 = vmatmul.f32.gmra.mxu0 %v1077
      %v1146 = vpop.f32.mrf.mxu0
      %v1147 = vadd.f32 %v1127, %v1146
      %1148 = vmatmul.f32.gmra.mxu0 %v1078
      %v1149 = vpop.f32.mrf.mxu0
      %v1150 = vadd.f32 %v1127, %v1149
      %1151 = vmatmul.f32.gmra.mxu0 %v1079
      %v1152 = vpop.f32.mrf.mxu0
      %v1153 = vadd.f32 %v1127, %v1152
      %1154 = vmatmul.f32.gmra.mxu0 %v1081
      %v1155 = vpop.f32.mrf.mxu0
      %v1156 = vadd.f32 %v1127, %v1155
      %1157 = vmatmul.f32.gmra.mxu0 %v1082
      %v1158 = vpop.f32.mrf.mxu0
      %v1159 = vadd.f32 %v1127, %v1158
      %1160 = vmatmul.f32.gmra.mxu0 %v1083
      %v1161 = vpop.f32.mrf.mxu0
      %v1162 = vadd.f32 %v1127, %v1161
      %1163 = vmatmul.f32.gmra.mxu0 %v1085
      %v1164 = vpop.f32.mrf.mxu0
      %v1165 = vadd.f32 %v1127, %v1164
      %1166 = vmatmul.f32.gmra.mxu0 %v1086
      %v1167 = vpop.f32.mrf.mxu0
      %v1168 = vadd.f32 %v1127, %v1167
      %1169 = vmatmul.f32.gmra.mxu0 %v1087
      %v1170 = vpop.f32.mrf.mxu0
      %v1171 = vadd.f32 %v1127, %v1170
      %1172 = vdwg.mxu0
      %1173 = vmatpush.xpose.msra.mxu0 0.0
      %1174 = vmatpush.xpose.msra.mxu0 0.0
      %1175 = vmatpush.xpose.msra.mxu0 0.0
      %1176 = vmatpush.xpose.msra.mxu0 0.0
      %1177 = vmatpush.xpose.msra.mxu0 0.0
      %1178 = vmatpush.xpose.msra.mxu0 0.0
      %1179 = vmatpush.xpose.msra.mxu0 0.0
      %1180 = vmatpush.xpose.msra.mxu0 0.0
      %1181 = vmatpush.xpose.msra.mxu0 %v1122
      %1182 = vmatpush.xpose.msra.mxu0 %v1118
      %1183 = vmatpush.xpose.msra.mxu0 %v1114
      %1184 = vmatpush.xpose.msra.mxu0 %v1110
      %1185 = vmatpush.xpose.msra.mxu0 %v1106
      %1186 = vmatpush.xpose.msra.mxu0 %v1102
      %1187 = vmatpush.xpose.msra.mxu0 %v1098
      %1188 = vmatpush.xpose.msra.mxu0 %v1094
      %1189 = vmatmul.f32.gmra.mxu0 %v1078
      %v1190 = vpop.f32.mrf.mxu0
      %v1191 = vadd.f32 %v1147, %v1190
      %1192 = vmatmul.f32.gmra.mxu0 %v1079
      %v1193 = vpop.f32.mrf.mxu0
      %v1194 = vadd.f32 %v1150, %v1193
      %1195 = vmatmul.f32.gmra.mxu0 %v1080
      %v1196 = vpop.f32.mrf.mxu0
      %v1197 = vadd.f32 %v1153, %v1196
      %1198 = vmatmul.f32.gmra.mxu0 %v1082
      %v1199 = vpop.f32.mrf.mxu0
      %v1200 = vadd.f32 %v1156, %v1199
      %1201 = vmatmul.f32.gmra.mxu0 %v1083
      %v1202 = vpop.f32.mrf.mxu0
      %v1203 = vadd.f32 %v1159, %v1202
      %1204 = vmatmul.f32.gmra.mxu0 %v1084
      %v1205 = vpop.f32.mrf.mxu0
      %v1206 = vadd.f32 %v1162, %v1205
      %1207 = vmatmul.f32.gmra.mxu0 %v1086
      %v1208 = vpop.f32.mrf.mxu0
      %v1209 = vadd.f32 %v1165, %v1208
      %1210 = vmatmul.f32.gmra.mxu0 %v1087
      %v1211 = vpop.f32.mrf.mxu0
      %v1212 = vadd.f32 %v1168, %v1211
      %1213 = vmatmul.f32.gmra.mxu0 %v1088
      %v1214 = vpop.f32.mrf.mxu0
      %v1215 = vadd.f32 %v1171, %v1214
      %1216 = vdwg.mxu0
      %1217 = vmatpush.xpose.msra.mxu0 0.0
      %1218 = vmatpush.xpose.msra.mxu0 0.0
      %1219 = vmatpush.xpose.msra.mxu0 0.0
      %1220 = vmatpush.xpose.msra.mxu0 0.0
      %1221 = vmatpush.xpose.msra.mxu0 0.0
      %1222 = vmatpush.xpose.msra.mxu0 0.0
      %1223 = vmatpush.xpose.msra.mxu0 0.0
      %1224 = vmatpush.xpose.msra.mxu0 0.0
      %1225 = vmatpush.xpose.msra.mxu0 %v1123
      %1226 = vmatpush.xpose.msra.mxu0 %v1119
      %1227 = vmatpush.xpose.msra.mxu0 %v1115
      %1228 = vmatpush.xpose.msra.mxu0 %v1111
      %1229 = vmatpush.xpose.msra.mxu0 %v1107
      %1230 = vmatpush.xpose.msra.mxu0 %v1103
      %1231 = vmatpush.xpose.msra.mxu0 %v1099
      %1232 = vmatpush.xpose.msra.mxu0 %v1095
      %1233 = vmatmul.f32.gmra.mxu0 %v1081
      %v1234 = vpop.f32.mrf.mxu0
      %v1235 = vadd.f32 %v1191, %v1234
      %1236 = vmatmul.f32.gmra.mxu0 %v1082
      %v1237 = vpop.f32.mrf.mxu0
      %v1238 = vadd.f32 %v1194, %v1237
      %1239 = vmatmul.f32.gmra.mxu0 %v1083
      %v1240 = vpop.f32.mrf.mxu0
      %v1241 = vadd.f32 %v1197, %v1240
      %1242 = vmatmul.f32.gmra.mxu0 %v1085
      %v1243 = vpop.f32.mrf.mxu0
      %v1244 = vadd.f32 %v1200, %v1243
      %1245 = vmatmul.f32.gmra.mxu0 %v1086
      %v1246 = vpop.f32.mrf.mxu0
      %v1247 = vadd.f32 %v1203, %v1246
      %1248 = vmatmul.f32.gmra.mxu0 %v1087
      %v1249 = vpop.f32.mrf.mxu0
      %v1250 = vadd.f32 %v1206, %v1249
      %1251 = vmatmul.f32.gmra.mxu0 %v1089
      %v1252 = vpop.f32.mrf.mxu0
      %v1253 = vadd.f32 %v1209, %v1252
      %1254 = vmatmul.f32.gmra.mxu0 %v1090
      %v1255 = vpop.f32.mrf.mxu0
      %v1256 = vadd.f32 %v1212, %v1255
      %1257 = vmatmul.f32.gmra.mxu0 %v1091
      %v1258 = vpop.f32.mrf.mxu0
      %v1259 = vadd.f32 %v1215, %v1258
      %1260 = vdwg.mxu0
      %1261 = vmatpush.xpose.msra.mxu0 0.0
      %1262 = vmatpush.xpose.msra.mxu0 0.0
      %1263 = vmatpush.xpose.msra.mxu0 0.0
      %1264 = vmatpush.xpose.msra.mxu0 0.0
      %1265 = vmatpush.xpose.msra.mxu0 0.0
      %1266 = vmatpush.xpose.msra.mxu0 0.0
      %1267 = vmatpush.xpose.msra.mxu0 0.0
      %1268 = vmatpush.xpose.msra.mxu0 0.0
      %1269 = vmatpush.xpose.msra.mxu0 %v1124
      %1270 = vmatpush.xpose.msra.mxu0 %v1120
      %1271 = vmatpush.xpose.msra.mxu0 %v1116
      %1272 = vmatpush.xpose.msra.mxu0 %v1112
      %1273 = vmatpush.xpose.msra.mxu0 %v1108
      %1274 = vmatpush.xpose.msra.mxu0 %v1104
      %1275 = vmatpush.xpose.msra.mxu0 %v1100
      %1276 = vmatpush.xpose.msra.mxu0 %v1096
      %1277 = vmatmul.f32.gmra.mxu0 %v1082
      %v1278 = vpop.f32.mrf.mxu0
      %v1279 = vadd.f32 %v1235, %v1278
      %1280 = vmatmul.f32.gmra.mxu0 %v1083
      %v1281 = vpop.f32.mrf.mxu0
      %v1282 = vadd.f32 %v1238, %v1281
      %1283 = vmatmul.f32.gmra.mxu0 %v1084
      %v1284 = vpop.f32.mrf.mxu0
      %v1285 = vadd.f32 %v1241, %v1284
      %1286 = vmatmul.f32.gmra.mxu0 %v1086
      %v1287 = vpop.f32.mrf.mxu0
      %v1288 = vadd.f32 %v1244, %v1287
      %1289 = vmatmul.f32.gmra.mxu0 %v1087
      %v1290 = vpop.f32.mrf.mxu0
      %v1291 = vadd.f32 %v1247, %v1290
      %1292 = vmatmul.f32.gmra.mxu0 %v1088
      %v1293 = vpop.f32.mrf.mxu0
      %v1294 = vadd.f32 %v1250, %v1293
      %1295 = vmatmul.f32.gmra.mxu0 %v1090
      %v1296 = vpop.f32.mrf.mxu0
      %v1297 = vadd.f32 %v1253, %v1296
      %1298 = vmatmul.f32.gmra.mxu0 %v1091
      %v1299 = vpop.f32.mrf.mxu0
      %v1300 = vadd.f32 %v1256, %v1299
      %1301 = vmatmul.f32.gmra.mxu0 %v1092
      %v1302 = vpop.f32.mrf.mxu0
      %v1303 = vadd.f32 %v1259, %v1302
      %1304 = vdwg.mxu0
      %v1305 = vmax.f32 %v1279, 0.0
      %v1306 = vmax.f32 %v1282, 0.0
      %v1307 = vmax.f32 %v1285, 0.0
      %v1308 = vmax.f32 %v1288, 0.0
      %v1309 = vmax.f32 %v1291, 0.0
      %v1310 = vmax.f32 %v1294, 0.0
      %v1311 = vmax.f32 %v1297, 0.0
      %v1312 = vmax.f32 %v1300, 0.0
      %v1313 = vmax.f32 %v1303, 0.0
      %1315 = vrot.lane.b32.xlu0 %v1306, 64
      %v1316 = vpop.permute.xlu0 %1315
      %1319 = vrot.lane.b32.xlu0 %v1308, 64
      %v1320 = vpop.permute.xlu0 %1319
      %1323 = vrot.lane.b32.xlu0 %v1310, 64
      %v1324 = vpop.permute.xlu0 %1323
      %1327 = vrot.lane.b32.xlu0 %v1312, 64
      %v1328 = vpop.permute.xlu0 %1327
      %v1330 = vsel %vm1059, %v1305, %v1316
      %v1331 = vsel %vm1059, %v1307, %v1320
      %v1332 = vsel %vm1059, %v1309, %v1324
      %v1333 = vsel %vm1059, %v1311, %v1328
      %v1334 = vld [vmem:[%s2 + $0x20] sm:$0xff]
      %v1335 = vld [vmem:[%s2 + $0x28] sm:$0xff]
      %v1336 = vld [vmem:[%s2 + $0x30] sm:$0xff]
      %v1337 = vld [vmem:[%s2 + $0x38] sm:$0xff]
      %v1338 = vld [vmem:[%s2 + $0x40] sm:$0xff]
      %v1339 = vld [vmem:[%s2 + $0xa8] sm:$0xff]
      %v1340 = vld [vmem:[%s2 + $0xb0] sm:$0xff]
      %v1341 = vld [vmem:[%s2 + $0xb8] sm:$0xff]
      %v1342 = vld [vmem:[%s2 + $0xc0] sm:$0xff]
      %v1343 = vld [vmem:[%s2 + $0xc8] sm:$0xff]
      %v1344 = vld [vmem:[%s2 + $0x130] sm:$0xff]
      %v1345 = vld [vmem:[%s2 + $0x138] sm:$0xff]
      %v1346 = vld [vmem:[%s2 + $0x140] sm:$0xff]
      %v1347 = vld [vmem:[%s2 + $0x148] sm:$0xff]
      %v1348 = vld [vmem:[%s2 + $0x150] sm:$0xff]
      %v1349 = vld [vmem:[%s2 + $0x1b8] sm:$0xff]
      %v1350 = vld [vmem:[%s2 + $0x1c0] sm:$0xff]
      %v1351 = vld [vmem:[%s2 + $0x1c8] sm:$0xff]
      %v1352 = vld [vmem:[%s2 + $0x1d0] sm:$0xff]
      %v1353 = vld [vmem:[%s2 + $0x1d8] sm:$0xff]
      %v1354 = vld [vmem:[%s2 + $0x240] sm:$0xff]
      %v1355 = vld [vmem:[%s2 + $0x248] sm:$0xff]
      %v1356 = vld [vmem:[%s2 + $0x250] sm:$0xff]
      %v1357 = vld [vmem:[%s2 + $0x258] sm:$0xff]
      %v1358 = vld [vmem:[%s2 + $0x260] sm:$0xff]
      %v1359 = vld [vmem:[%s2 + $0x2c8] sm:$0xff]
      %v1360 = vld [vmem:[%s2 + $0x2d0] sm:$0xff]
      %v1361 = vld [vmem:[%s2 + $0x2d8] sm:$0xff]
      %v1362 = vld [vmem:[%s2 + $0x2e0] sm:$0xff]
      %v1363 = vld [vmem:[%s2 + $0x2e8] sm:$0xff]
      %v1364 = vld [vmem:[%s2 + $0x350] sm:$0xff]
      %v1365 = vld [vmem:[%s2 + $0x358] sm:$0xff]
      %v1366 = vld [vmem:[%s2 + $0x360] sm:$0xff]
      %v1367 = vld [vmem:[%s2 + $0x368] sm:$0xff]
      %v1368 = vld [vmem:[%s2 + $0x370] sm:$0xff]
      %v1369 = vld [vmem:[%s2 + $0x3d8] sm:$0xff]
      %v1370 = vld [vmem:[%s2 + $0x3e0] sm:$0xff]
      %v1371 = vld [vmem:[%s2 + $0x3e8] sm:$0xff]
      %v1372 = vld [vmem:[%s2 + $0x3f0] sm:$0xff]
      %v1373 = vld [vmem:[%s2 + $0x3f8] sm:$0xff]
      %v1374 = vld [vmem:[%s4 + $0x2] sm:$0x1]
      %v1376 = vperm.slane %v1374, 0
      %v1379 = vsel %vm1059, %v1313, 0
      %v1382 = vsel %vm1059, %v1338, 0
      %v1385 = vsel %vm1059, %v1343, 0
      %v1388 = vsel %vm1059, %v1348, 0
      %v1391 = vsel %vm1059, %v1353, 0
      %v1394 = vsel %vm1059, %v1358, 0
      %v1397 = vsel %vm1059, %v1363, 0
      %v1400 = vsel %vm1059, %v1368, 0
      %v1403 = vsel %vm1059, %v1373, 0
      %1405 = vmatpush.xpose.msra.mxu0 0.0
      %1406 = vmatpush.xpose.msra.mxu0 0.0
      %1407 = vmatpush.xpose.msra.mxu0 0.0
      %1408 = vmatpush.xpose.msra.mxu0 0.0
      %1409 = vmatpush.xpose.msra.mxu0 0.0
      %1410 = vmatpush.xpose.msra.mxu0 0.0
      %1411 = vmatpush.xpose.msra.mxu0 0.0
      %1412 = vmatpush.xpose.msra.mxu0 0.0
      %1413 = vmatpush.xpose.msra.mxu0 %v1369
      %1414 = vmatpush.xpose.msra.mxu0 %v1364
      %1415 = vmatpush.xpose.msra.mxu0 %v1359
      %1416 = vmatpush.xpose.msra.mxu0 %v1354
      %1417 = vmatpush.xpose.msra.mxu0 %v1349
      %1418 = vmatpush.xpose.msra.mxu0 %v1344
      %1419 = vmatpush.xpose.msra.mxu0 %v1339
      %1420 = vmatpush.xpose.msra.mxu0 %v1334
      %1421 = vmatmul.f32.gmra.mxu0 %v1330
      %v1422 = vpop.f32.mrf.mxu0
      %v1423 = vadd.f32 %v1376, %v1422
      %1424 = vdwg.mxu0
      %1425 = vmatpush.xpose.msra.mxu0 0.0
      %1426 = vmatpush.xpose.msra.mxu0 0.0
      %1427 = vmatpush.xpose.msra.mxu0 0.0
      %1428 = vmatpush.xpose.msra.mxu0 0.0
      %1429 = vmatpush.xpose.msra.mxu0 0.0
      %1430 = vmatpush.xpose.msra.mxu0 0.0
      %1431 = vmatpush.xpose.msra.mxu0 0.0
      %1432 = vmatpush.xpose.msra.mxu0 0.0
      %1433 = vmatpush.xpose.msra.mxu0 %v1370
      %1434 = vmatpush.xpose.msra.mxu0 %v1365
      %1435 = vmatpush.xpose.msra.mxu0 %v1360
      %1436 = vmatpush.xpose.msra.mxu0 %v1355
      %1437 = vmatpush.xpose.msra.mxu0 %v1350
      %1438 = vmatpush.xpose.msra.mxu0 %v1345
      %1439 = vmatpush.xpose.msra.mxu0 %v1340
      %1440 = vmatpush.xpose.msra.mxu0 %v1335
      %1441 = vmatmul.f32.gmra.mxu0 %v1331
      %v1442 = vpop.f32.mrf.mxu0
      %v1443 = vadd.f32 %v1423, %v1442
      %1444 = vdwg.mxu0
      %1445 = vmatpush.xpose.msra.mxu0 0.0
      %1446 = vmatpush.xpose.msra.mxu0 0.0
      %1447 = vmatpush.xpose.msra.mxu0 0.0
      %1448 = vmatpush.xpose.msra.mxu0 0.0
      %1449 = vmatpush.xpose.msra.mxu0 0.0
      %1450 = vmatpush.xpose.msra.mxu0 0.0
      %1451 = vmatpush.xpose.msra.mxu0 0.0
      %1452 = vmatpush.xpose.msra.mxu0 0.0
      %1453 = vmatpush.xpose.msra.mxu0 %v1371
      %1454 = vmatpush.xpose.msra.mxu0 %v1366
      %1455 = vmatpush.xpose.msra.mxu0 %v1361
      %1456 = vmatpush.xpose.msra.mxu0 %v1356
      %1457 = vmatpush.xpose.msra.mxu0 %v1351
      %1458 = vmatpush.xpose.msra.mxu0 %v1346
      %1459 = vmatpush.xpose.msra.mxu0 %v1341
      %1460 = vmatpush.xpose.msra.mxu0 %v1336
      %1461 = vmatmul.f32.gmra.mxu0 %v1332
      %v1462 = vpop.f32.mrf.mxu0
      %v1463 = vadd.f32 %v1443, %v1462
      %1464 = vdwg.mxu0
      %1465 = vmatpush.xpose.msra.mxu0 0.0
      %1466 = vmatpush.xpose.msra.mxu0 0.0
      %1467 = vmatpush.xpose.msra.mxu0 0.0
      %1468 = vmatpush.xpose.msra.mxu0 0.0
      %1469 = vmatpush.xpose.msra.mxu0 0.0
      %1470 = vmatpush.xpose.msra.mxu0 0.0
      %1471 = vmatpush.xpose.msra.mxu0 0.0
      %1472 = vmatpush.xpose.msra.mxu0 0.0
      %1473 = vmatpush.xpose.msra.mxu0 %v1372
      %1474 = vmatpush.xpose.msra.mxu0 %v1367
      %1475 = vmatpush.xpose.msra.mxu0 %v1362
      %1476 = vmatpush.xpose.msra.mxu0 %v1357
      %1477 = vmatpush.xpose.msra.mxu0 %v1352
      %1478 = vmatpush.xpose.msra.mxu0 %v1347
      %1479 = vmatpush.xpose.msra.mxu0 %v1342
      %1480 = vmatpush.xpose.msra.mxu0 %v1337
      %1481 = vmatmul.f32.gmra.mxu0 %v1333
      %v1482 = vpop.f32.mrf.mxu0
      %v1483 = vadd.f32 %v1463, %v1482
      %1484 = vdwg.mxu0
      %1485 = vmatpush.xpose.msra.mxu0 0.0
      %1486 = vmatpush.xpose.msra.mxu0 0.0
      %1487 = vmatpush.xpose.msra.mxu0 0.0
      %1488 = vmatpush.xpose.msra.mxu0 0.0
      %1489 = vmatpush.xpose.msra.mxu0 0.0
      %1490 = vmatpush.xpose.msra.mxu0 0.0
      %1491 = vmatpush.xpose.msra.mxu0 0.0
      %1492 = vmatpush.xpose.msra.mxu0 0.0
      %1493 = vmatpush.xpose.msra.mxu0 %v1403
      %1494 = vmatpush.xpose.msra.mxu0 %v1400
      %1495 = vmatpush.xpose.msra.mxu0 %v1397
      %1496 = vmatpush.xpose.msra.mxu0 %v1394
      %1497 = vmatpush.xpose.msra.mxu0 %v1391
      %1498 = vmatpush.xpose.msra.mxu0 %v1388
      %1499 = vmatpush.xpose.msra.mxu0 %v1385
      %1500 = vmatpush.xpose.msra.mxu0 %v1382
      %1501 = vmatmul.f32.gmra.mxu0 %v1379
      %v1502 = vpop.f32.mrf.mxu0
      %v1503 = vadd.f32 %v1483, %v1502
      %1504 = vdwg.mxu0
      %v1505 = vmax.f32 %v1503, 0.0
      %v1506 = vld [vmem:[%s2 + $0x48] sm:$0xff]
      %v1507 = vld [vmem:[%s2 + $0x50] sm:$0xff]
      %v1508 = vld [vmem:[%s2 + $0x58] sm:$0xff]
      %v1509 = vld [vmem:[%s2 + $0x60] sm:$0xff]
      %v1510 = vld [vmem:[%s2 + $0x68] sm:$0xff]
      %v1511 = vld [vmem:[%s2 + $0x70] sm:$0xff]
      %v1512 = vld [vmem:[%s2 + $0x78] sm:$0xff]
      %v1513 = vld [vmem:[%s2 + $0x80] sm:$0xff]
      %v1514 = vld [vmem:[%s2 + $0xd0] sm:$0xff]
      %v1515 = vld [vmem:[%s2 + $0xd8] sm:$0xff]
      %v1516 = vld [vmem:[%s2 + $0xe0] sm:$0xff]
      %v1517 = vld [vmem:[%s2 + $0xe8] sm:$0xff]
      %v1518 = vld [vmem:[%s2 + $0xf0] sm:$0xff]
      %v1519 = vld [vmem:[%s2 + $0xf8] sm:$0xff]
      %v1520 = vld [vmem:[%s2 + $0x100] sm:$0xff]
      %v1521 = vld [vmem:[%s2 + $0x108] sm:$0xff]
      %v1522 = vld [vmem:[%s2 + $0x158] sm:$0xff]
      %v1523 = vld [vmem:[%s2 + $0x160] sm:$0xff]
      %v1524 = vld [vmem:[%s2 + $0x168] sm:$0xff]
      %v1525 = vld [vmem:[%s2 + $0x170] sm:$0xff]
      %v1526 = vld [vmem:[%s2 + $0x178] sm:$0xff]
      %v1527 = vld [vmem:[%s2 + $0x180] sm:$0xff]
      %v1528 = vld [vmem:[%s2 + $0x188] sm:$0xff]
      %v1529 = vld [vmem:[%s2 + $0x190] sm:$0xff]
      %v1530 = vld [vmem:[%s2 + $0x1e0] sm:$0xff]
      %v1531 = vld [vmem:[%s2 + $0x1e8] sm:$0xff]
      %v1532 = vld [vmem:[%s2 + $0x1f0] sm:$0xff]
      %v1533 = vld [vmem:[%s2 + $0x1f8] sm:$0xff]
      %v1534 = vld [vmem:[%s2 + $0x200] sm:$0xff]
      %v1535 = vld [vmem:[%s2 + $0x208] sm:$0xff]
      %v1536 = vld [vmem:[%s2 + $0x210] sm:$0xff]
      %v1537 = vld [vmem:[%s2 + $0x218] sm:$0xff]
      %v1538 = vld [vmem:[%s2 + $0x268] sm:$0xff]
      %v1539 = vld [vmem:[%s2 + $0x270] sm:$0xff]
      %v1540 = vld [vmem:[%s2 + $0x278] sm:$0xff]
      %v1541 = vld [vmem:[%s2 + $0x280] sm:$0xff]
      %v1542 = vld [vmem:[%s2 + $0x288] sm:$0xff]
      %v1543 = vld [vmem:[%s2 + $0x290] sm:$0xff]
      %v1544 = vld [vmem:[%s2 + $0x298] sm:$0xff]
      %v1545 = vld [vmem:[%s2 + $0x2a0] sm:$0xff]
      %v1546 = vld [vmem:[%s2 + $0x2f0] sm:$0xff]
      %v1547 = vld [vmem:[%s2 + $0x2f8] sm:$0xff]
      %v1548 = vld [vmem:[%s2 + $0x300] sm:$0xff]
      %v1549 = vld [vmem:[%s2 + $0x308] sm:$0xff]
      %v1550 = vld [vmem:[%s2 + $0x310] sm:$0xff]
      %v1551 = vld [vmem:[%s2 + $0x318] sm:$0xff]
      %v1552 = vld [vmem:[%s2 + $0x320] sm:$0xff]
      %v1553 = vld [vmem:[%s2 + $0x328] sm:$0xff]
      %v1554 = vld [vmem:[%s2 + $0x378] sm:$0xff]
      %v1555 = vld [vmem:[%s2 + $0x380] sm:$0xff]
      %v1556 = vld [vmem:[%s2 + $0x388] sm:$0xff]
      %v1557 = vld [vmem:[%s2 + $0x390] sm:$0xff]
      %v1558 = vld [vmem:[%s2 + $0x398] sm:$0xff]
      %v1559 = vld [vmem:[%s2 + $0x3a0] sm:$0xff]
      %v1560 = vld [vmem:[%s2 + $0x3a8] sm:$0xff]
      %v1561 = vld [vmem:[%s2 + $0x3b0] sm:$0xff]
      %v1562 = vld [vmem:[%s2 + $0x400] sm:$0xff]
      %v1563 = vld [vmem:[%s2 + $0x408] sm:$0xff]
      %v1564 = vld [vmem:[%s2 + $0x410] sm:$0xff]
      %v1565 = vld [vmem:[%s2 + $0x418] sm:$0xff]
      %v1566 = vld [vmem:[%s2 + $0x420] sm:$0xff]
      %v1567 = vld [vmem:[%s2 + $0x428] sm:$0xff]
      %v1568 = vld [vmem:[%s2 + $0x430] sm:$0xff]
      %v1569 = vld [vmem:[%s2 + $0x438] sm:$0xff]
      %v1570 = vld [vmem:[%s4 + $0x3] sm:$0xff]
      %v1572 = vperm.slane %v1570, 0
      %v1573 = vperm.slane %v1570, 1
      %v1574 = vperm.slane %v1570, 2
      %v1575 = vperm.slane %v1570, 3
      %v1576 = vperm.slane %v1570, 4
      %v1577 = vperm.slane %v1570, 5
      %v1578 = vperm.slane %v1570, 6
      %v1579 = vperm.slane %v1570, 7
      %v1589 = vsel %vm1059, %v1505, 0
      %1591 = vmatpush.msra.mxu0 0.0
      %1592 = vmatpush.msra.mxu0 0.0
      %1593 = vmatpush.msra.mxu0 0.0
      %1594 = vmatpush.msra.mxu0 0.0
      %1595 = vmatpush.msra.mxu0 0.0
      %1596 = vmatpush.msra.mxu0 0.0
      %1597 = vmatpush.msra.mxu0 0.0
      %1598 = vmatpush.msra.mxu0 0.0
      %1599 = vmatpush.msra.mxu0 %v1562
      %1600 = vmatpush.msra.mxu0 %v1554
      %1601 = vmatpush.msra.mxu0 %v1546
      %1602 = vmatpush.msra.mxu0 %v1538
      %1603 = vmatpush.msra.mxu0 %v1530
      %1604 = vmatpush.msra.mxu0 %v1522
      %1605 = vmatpush.msra.mxu0 %v1514
      %1606 = vmatpush.msra.mxu0 %v1506
      %1607 = vmatmul.f32.gmra.mxu0 %v1589
      %v1608 = vpop.f32.mrf.mxu0
      %v1609 = vadd.f32 %v1572, %v1608
      %1610 = vdwg.mxu0
      %1611 = vmatpush.msra.mxu0 0.0
      %1612 = vmatpush.msra.mxu0 0.0
      %1613 = vmatpush.msra.mxu0 0.0
      %1614 = vmatpush.msra.mxu0 0.0
      %1615 = vmatpush.msra.mxu0 0.0
      %1616 = vmatpush.msra.mxu0 0.0
      %1617 = vmatpush.msra.mxu0 0.0
      %1618 = vmatpush.msra.mxu0 0.0
      %1619 = vmatpush.msra.mxu0 %v1563
      %1620 = vmatpush.msra.mxu0 %v1555
      %1621 = vmatpush.msra.mxu0 %v1547
      %1622 = vmatpush.msra.mxu0 %v1539
      %1623 = vmatpush.msra.mxu0 %v1531
      %1624 = vmatpush.msra.mxu0 %v1523
      %1625 = vmatpush.msra.mxu0 %v1515
      %1626 = vmatpush.msra.mxu0 %v1507
      %1627 = vmatmul.f32.gmra.mxu0 %v1589
      %v1628 = vpop.f32.mrf.mxu0
      %v1629 = vadd.f32 %v1573, %v1628
      %1630 = vdwg.mxu0
      %1631 = vmatpush.msra.mxu0 0.0
      %1632 = vmatpush.msra.mxu0 0.0
      %1633 = vmatpush.msra.mxu0 0.0
      %1634 = vmatpush.msra.mxu0 0.0
      %1635 = vmatpush.msra.mxu0 0.0
      %1636 = vmatpush.msra.mxu0 0.0
      %1637 = vmatpush.msra.mxu0 0.0
      %1638 = vmatpush.msra.mxu0 0.0
      %1639 = vmatpush.msra.mxu0 %v1564
      %1640 = vmatpush.msra.mxu0 %v1556
      %1641 = vmatpush.msra.mxu0 %v1548
      %1642 = vmatpush.msra.mxu0 %v1540
      %1643 = vmatpush.msra.mxu0 %v1532
      %1644 = vmatpush.msra.mxu0 %v1524
      %1645 = vmatpush.msra.mxu0 %v1516
      %1646 = vmatpush.msra.mxu0 %v1508
      %1647 = vmatmul.f32.gmra.mxu0 %v1589
      %v1648 = vpop.f32.mrf.mxu0
      %v1649 = vadd.f32 %v1574, %v1648
      %1650 = vdwg.mxu0
      %1651 = vmatpush.msra.mxu0 0.0
      %1652 = vmatpush.msra.mxu0 0.0
      %1653 = vmatpush.msra.mxu0 0.0
      %1654 = vmatpush.msra.mxu0 0.0
      %1655 = vmatpush.msra.mxu0 0.0
      %1656 = vmatpush.msra.mxu0 0.0
      %1657 = vmatpush.msra.mxu0 0.0
      %1658 = vmatpush.msra.mxu0 0.0
      %1659 = vmatpush.msra.mxu0 %v1565
      %1660 = vmatpush.msra.mxu0 %v1557
      %1661 = vmatpush.msra.mxu0 %v1549
      %1662 = vmatpush.msra.mxu0 %v1541
      %1663 = vmatpush.msra.mxu0 %v1533
      %1664 = vmatpush.msra.mxu0 %v1525
      %1665 = vmatpush.msra.mxu0 %v1517
      %1666 = vmatpush.msra.mxu0 %v1509
      %1667 = vmatmul.f32.gmra.mxu0 %v1589
      %v1668 = vpop.f32.mrf.mxu0
      %v1669 = vadd.f32 %v1575, %v1668
      %1670 = vdwg.mxu0
      %1671 = vmatpush.msra.mxu0 0.0
      %1672 = vmatpush.msra.mxu0 0.0
      %1673 = vmatpush.msra.mxu0 0.0
      %1674 = vmatpush.msra.mxu0 0.0
      %1675 = vmatpush.msra.mxu0 0.0
      %1676 = vmatpush.msra.mxu0 0.0
      %1677 = vmatpush.msra.mxu0 0.0
      %1678 = vmatpush.msra.mxu0 0.0
      %1679 = vmatpush.msra.mxu0 %v1566
      %1680 = vmatpush.msra.mxu0 %v1558
      %1681 = vmatpush.msra.mxu0 %v1550
      %1682 = vmatpush.msra.mxu0 %v1542
      %1683 = vmatpush.msra.mxu0 %v1534
      %1684 = vmatpush.msra.mxu0 %v1526
      %1685 = vmatpush.msra.mxu0 %v1518
      %1686 = vmatpush.msra.mxu0 %v1510
      %1687 = vmatmul.f32.gmra.mxu0 %v1589
      %v1688 = vpop.f32.mrf.mxu0
      %v1689 = vadd.f32 %v1576, %v1688
      %1690 = vdwg.mxu0
      %1691 = vmatpush.msra.mxu0 0.0
      %1692 = vmatpush.msra.mxu0 0.0
      %1693 = vmatpush.msra.mxu0 0.0
      %1694 = vmatpush.msra.mxu0 0.0
      %1695 = vmatpush.msra.mxu0 0.0
      %1696 = vmatpush.msra.mxu0 0.0
      %1697 = vmatpush.msra.mxu0 0.0
      %1698 = vmatpush.msra.mxu0 0.0
      %1699 = vmatpush.msra.mxu0 %v1567
      %1700 = vmatpush.msra.mxu0 %v1559
      %1701 = vmatpush.msra.mxu0 %v1551
      %1702 = vmatpush.msra.mxu0 %v1543
      %1703 = vmatpush.msra.mxu0 %v1535
      %1704 = vmatpush.msra.mxu0 %v1527
      %1705 = vmatpush.msra.mxu0 %v1519
      %1706 = vmatpush.msra.mxu0 %v1511
      %1707 = vmatmul.f32.gmra.mxu0 %v1589
      %v1708 = vpop.f32.mrf.mxu0
      %v1709 = vadd.f32 %v1577, %v1708
      %1710 = vdwg.mxu0
      %1711 = vmatpush.msra.mxu0 0.0
      %1712 = vmatpush.msra.mxu0 0.0
      %1713 = vmatpush.msra.mxu0 0.0
      %1714 = vmatpush.msra.mxu0 0.0
      %1715 = vmatpush.msra.mxu0 0.0
      %1716 = vmatpush.msra.mxu0 0.0
      %1717 = vmatpush.msra.mxu0 0.0
      %1718 = vmatpush.msra.mxu0 0.0
      %1719 = vmatpush.msra.mxu0 %v1568
      %1720 = vmatpush.msra.mxu0 %v1560
      %1721 = vmatpush.msra.mxu0 %v1552
      %1722 = vmatpush.msra.mxu0 %v1544
      %1723 = vmatpush.msra.mxu0 %v1536
      %1724 = vmatpush.msra.mxu0 %v1528
      %1725 = vmatpush.msra.mxu0 %v1520
      %1726 = vmatpush.msra.mxu0 %v1512
      %1727 = vmatmul.f32.gmra.mxu0 %v1589
      %v1728 = vpop.f32.mrf.mxu0
      %v1729 = vadd.f32 %v1578, %v1728
      %1730 = vdwg.mxu0
      %1731 = vmatpush.msra.mxu0 0.0
      %1732 = vmatpush.msra.mxu0 0.0
      %1733 = vmatpush.msra.mxu0 0.0
      %1734 = vmatpush.msra.mxu0 0.0
      %1735 = vmatpush.msra.mxu0 0.0
      %1736 = vmatpush.msra.mxu0 0.0
      %1737 = vmatpush.msra.mxu0 0.0
      %1738 = vmatpush.msra.mxu0 0.0
      %1739 = vmatpush.msra.mxu0 %v1569
      %1740 = vmatpush.msra.mxu0 %v1561
      %1741 = vmatpush.msra.mxu0 %v1553
      %1742 = vmatpush.msra.mxu0 %v1545
      %1743 = vmatpush.msra.mxu0 %v1537
      %1744 = vmatpush.msra.mxu0 %v1529
      %1745 = vmatpush.msra.mxu0 %v1521
      %1746 = vmatpush.msra.mxu0 %v1513
      %1747 = vmatmul.f32.gmra.mxu0 %v1589
      %v1748 = vpop.f32.mrf.mxu0
      %v1749 = vadd.f32 %v1579, %v1748
      %1750 = vdwg.mxu0
      %v1751 = vmax.f32 %v1609, 0.0
      %v1752 = vmax.f32 %v1629, 0.0
      %v1753 = vmax.f32 %v1649, 0.0
      %v1754 = vmax.f32 %v1669, 0.0
      %v1755 = vmax.f32 %v1689, 0.0
      %v1756 = vmax.f32 %v1709, 0.0
      %v1757 = vmax.f32 %v1729, 0.0
      %v1758 = vmax.f32 %v1749, 0.0
      %v1759 = vld [vmem:[%s3] sm:$0xff]
      %v1760 = vld [vmem:[%s3 + $0x8] sm:$0xff]
      %v1761 = vld [vmem:[%s3 + $0x10] sm:$0xff]
      %v1762 = vld [vmem:[%s3 + $0x18] sm:$0xff]
      %v1763 = vld [vmem:[%s3 + $0x20] sm:$0xff]
      %v1764 = vld [vmem:[%s3 + $0x28] sm:$0xff]
      %v1765 = vld [vmem:[%s3 + $0x30] sm:$0xff]
      %v1766 = vld [vmem:[%s3 + $0x38] sm:$0xff]
      %v1767 = vld [vmem:[%s4 + $0xb] sm:$0x1]
      %v1769 = vperm.slane %v1767, 0
      %1771 = vmatpush.xpose.msra.mxu0 0.0
      %1772 = vmatpush.xpose.msra.mxu0 0.0
      %1773 = vmatpush.xpose.msra.mxu0 0.0
      %1774 = vmatpush.xpose.msra.mxu0 0.0
      %1775 = vmatpush.xpose.msra.mxu0 0.0
      %1776 = vmatpush.xpose.msra.mxu0 0.0
      %1777 = vmatpush.xpose.msra.mxu0 0.0
      %1778 = vmatpush.xpose.msra.mxu0 0.0
      %1779 = vmatpush.xpose.msra.mxu0 0.0
      %1780 = vmatpush.xpose.msra.mxu0 0.0
      %1781 = vmatpush.xpose.msra.mxu0 0.0
      %1782 = vmatpush.xpose.msra.mxu0 0.0
      %1783 = vmatpush.xpose.msra.mxu0 0.0
      %1784 = vmatpush.xpose.msra.mxu0 0.0
      %1785 = vmatpush.xpose.msra.mxu0 0.0
      %1786 = vmatpush.xpose.msra.mxu0 %v1759
      %1787 = vmatmul.f32.gmra.mxu0 %v1751
      %v1788 = vpop.f32.mrf.mxu0
      %v1789 = vadd.f32 %v1769, %v1788
      %1790 = vdwg.mxu0
      %1791 = vmatpush.xpose.msra.mxu0 0.0
      %1792 = vmatpush.xpose.msra.mxu0 0.0
      %1793 = vmatpush.xpose.msra.mxu0 0.0
      %1794 = vmatpush.xpose.msra.mxu0 0.0
      %1795 = vmatpush.xpose.msra.mxu0 0.0
      %1796 = vmatpush.xpose.msra.mxu0 0.0
      %1797 = vmatpush.xpose.msra.mxu0 0.0
      %1798 = vmatpush.xpose.msra.mxu0 0.0
      %1799 = vmatpush.xpose.msra.mxu0 0.0
      %1800 = vmatpush.xpose.msra.mxu0 0.0
      %1801 = vmatpush.xpose.msra.mxu0 0.0
      %1802 = vmatpush.xpose.msra.mxu0 0.0
      %1803 = vmatpush.xpose.msra.mxu0 0.0
      %1804 = vmatpush.xpose.msra.mxu0 0.0
      %1805 = vmatpush.xpose.msra.mxu0 0.0
      %1806 = vmatpush.xpose.msra.mxu0 %v1760
      %1807 = vmatmul.f32.gmra.mxu0 %v1752
      %v1808 = vpop.f32.mrf.mxu0
      %v1809 = vadd.f32 %v1789, %v1808
      %1810 = vdwg.mxu0
      %1811 = vmatpush.xpose.msra.mxu0 0.0
      %1812 = vmatpush.xpose.msra.mxu0 0.0
      %1813 = vmatpush.xpose.msra.mxu0 0.0
      %1814 = vmatpush.xpose.msra.mxu0 0.0
      %1815 = vmatpush.xpose.msra.mxu0 0.0
      %1816 = vmatpush.xpose.msra.mxu0 0.0
      %1817 = vmatpush.xpose.msra.mxu0 0.0
      %1818 = vmatpush.xpose.msra.mxu0 0.0
      %1819 = vmatpush.xpose.msra.mxu0 0.0
      %1820 = vmatpush.xpose.msra.mxu0 0.0
      %1821 = vmatpush.xpose.msra.mxu0 0.0
      %1822 = vmatpush.xpose.msra.mxu0 0.0
      %1823 = vmatpush.xpose.msra.mxu0 0.0
      %1824 = vmatpush.xpose.msra.mxu0 0.0
      %1825 = vmatpush.xpose.msra.mxu0 0.0
      %1826 = vmatpush.xpose.msra.mxu0 %v1761
      %1827 = vmatmul.f32.gmra.mxu0 %v1753
      %v1828 = vpop.f32.mrf.mxu0
      %v1829 = vadd.f32 %v1809, %v1828
      %1830 = vdwg.mxu0
      %1831 = vmatpush.xpose.msra.mxu0 0.0
      %1832 = vmatpush.xpose.msra.mxu0 0.0
      %1833 = vmatpush.xpose.msra.mxu0 0.0
      %1834 = vmatpush.xpose.msra.mxu0 0.0
      %1835 = vmatpush.xpose.msra.mxu0 0.0
      %1836 = vmatpush.xpose.msra.mxu0 0.0
      %1837 = vmatpush.xpose.msra.mxu0 0.0
      %1838 = vmatpush.xpose.msra.mxu0 0.0
      %1839 = vmatpush.xpose.msra.mxu0 0.0
      %1840 = vmatpush.xpose.msra.mxu0 0.0
      %1841 = vmatpush.xpose.msra.mxu0 0.0
      %1842 = vmatpush.xpose.msra.mxu0 0.0
      %1843 = vmatpush.xpose.msra.mxu0 0.0
      %1844 = vmatpush.xpose.msra.mxu0 0.0
      %1845 = vmatpush.xpose.msra.mxu0 0.0
      %1846 = vmatpush.xpose.msra.mxu0 %v1762
      %1847 = vmatmul.f32.gmra.mxu0 %v1754
      %v1848 = vpop.f32.mrf.mxu0
      %v1849 = vadd.f32 %v1829, %v1848
      %1850 = vdwg.mxu0
      %1851 = vmatpush.xpose.msra.mxu0 0.0
      %1852 = vmatpush.xpose.msra.mxu0 0.0
      %1853 = vmatpush.xpose.msra.mxu0 0.0
      %1854 = vmatpush.xpose.msra.mxu0 0.0
      %1855 = vmatpush.xpose.msra.mxu0 0.0
      %1856 = vmatpush.xpose.msra.mxu0 0.0
      %1857 = vmatpush.xpose.msra.mxu0 0.0
      %1858 = vmatpush.xpose.msra.mxu0 0.0
      %1859 = vmatpush.xpose.msra.mxu0 0.0
      %1860 = vmatpush.xpose.msra.mxu0 0.0
      %1861 = vmatpush.xpose.msra.mxu0 0.0
      %1862 = vmatpush.xpose.msra.mxu0 0.0
      %1863 = vmatpush.xpose.msra.mxu0 0.0
      %1864 = vmatpush.xpose.msra.mxu0 0.0
      %1865 = vmatpush.xpose.msra.mxu0 0.0
      %1866 = vmatpush.xpose.msra.mxu0 %v1763
      %1867 = vmatmul.f32.gmra.mxu0 %v1755
      %v1868 = vpop.f32.mrf.mxu0
      %v1869 = vadd.f32 %v1849, %v1868
      %1870 = vdwg.mxu0
      %1871 = vmatpush.xpose.msra.mxu0 0.0
      %1872 = vmatpush.xpose.msra.mxu0 0.0
      %1873 = vmatpush.xpose.msra.mxu0 0.0
      %1874 = vmatpush.xpose.msra.mxu0 0.0
      %1875 = vmatpush.xpose.msra.mxu0 0.0
      %1876 = vmatpush.xpose.msra.mxu0 0.0
      %1877 = vmatpush.xpose.msra.mxu0 0.0
      %1878 = vmatpush.xpose.msra.mxu0 0.0
      %1879 = vmatpush.xpose.msra.mxu0 0.0
      %1880 = vmatpush.xpose.msra.mxu0 0.0
      %1881 = vmatpush.xpose.msra.mxu0 0.0
      %1882 = vmatpush.xpose.msra.mxu0 0.0
      %1883 = vmatpush.xpose.msra.mxu0 0.0
      %1884 = vmatpush.xpose.msra.mxu0 0.0
      %1885 = vmatpush.xpose.msra.mxu0 0.0
      %1886 = vmatpush.xpose.msra.mxu0 %v1764
      %1887 = vmatmul.f32.gmra.mxu0 %v1756
      %v1888 = vpop.f32.mrf.mxu0
      %v1889 = vadd.f32 %v1869, %v1888
      %1890 = vdwg.mxu0
      %1891 = vmatpush.xpose.msra.mxu0 0.0
      %1892 = vmatpush.xpose.msra.mxu0 0.0
      %1893 = vmatpush.xpose.msra.mxu0 0.0
      %1894 = vmatpush.xpose.msra.mxu0 0.0
      %1895 = vmatpush.xpose.msra.mxu0 0.0
      %1896 = vmatpush.xpose.msra.mxu0 0.0
      %1897 = vmatpush.xpose.msra.mxu0 0.0
      %1898 = vmatpush.xpose.msra.mxu0 0.0
      %1899 = vmatpush.xpose.msra.mxu0 0.0
      %1900 = vmatpush.xpose.msra.mxu0 0.0
      %1901 = vmatpush.xpose.msra.mxu0 0.0
      %1902 = vmatpush.xpose.msra.mxu0 0.0
      %1903 = vmatpush.xpose.msra.mxu0 0.0
      %1904 = vmatpush.xpose.msra.mxu0 0.0
      %1905 = vmatpush.xpose.msra.mxu0 0.0
      %1906 = vmatpush.xpose.msra.mxu0 %v1765
      %1907 = vmatmul.f32.gmra.mxu0 %v1757
      %v1908 = vpop.f32.mrf.mxu0
      %v1909 = vadd.f32 %v1889, %v1908
      %1910 = vdwg.mxu0
      %1911 = vmatpush.xpose.msra.mxu0 0.0
      %1912 = vmatpush.xpose.msra.mxu0 0.0
      %1913 = vmatpush.xpose.msra.mxu0 0.0
      %1914 = vmatpush.xpose.msra.mxu0 0.0
      %1915 = vmatpush.xpose.msra.mxu0 0.0
      %1916 = vmatpush.xpose.msra.mxu0 0.0
      %1917 = vmatpush.xpose.msra.mxu0 0.0
      %1918 = vmatpush.xpose.msra.mxu0 0.0
      %1919 = vmatpush.xpose.msra.mxu0 0.0
      %1920 = vmatpush.xpose.msra.mxu0 0.0
      %1921 = vmatpush.xpose.msra.mxu0 0.0
      %1922 = vmatpush.xpose.msra.mxu0 0.0
      %1923 = vmatpush.xpose.msra.mxu0 0.0
      %1924 = vmatpush.xpose.msra.mxu0 0.0
      %1925 = vmatpush.xpose.msra.mxu0 0.0
      %1926 = vmatpush.xpose.msra.mxu0 %v1766
      %1927 = vmatmul.f32.gmra.mxu0 %v1758
      %v1928 = vpop.f32.mrf.mxu0
      %v1929 = vadd.f32 %v1909, %v1928
      %1930 = vdwg.mxu0
      %vm1931 = vcmask 48128
      %1932 = vst.msk [vmem:[%s227] sm:$0xff] %vm1931, %v1929
      %p1933 = scmp.lt.s32.totalorder %s16, 1
      %s1934 = scalar_select %p1933, %s16, 1
      %s1935 = smul.addr %s1934, 8
      %s1936 = scalar_lea.vmem %s5, %s1935
      // Predicated region
      $region41: #{dueling_dqn_forward.1} parent=39 // pred_check
        %p1937 = pneg %p144
      $region42: #{dueling_dqn_forward.1} parent=39 // pred_check_branch
        %1939 = sbr.rel (%p1937) target = $region44
      $region43: #{dueling_dqn_forward.1} parent=39 // pred_region
        _
      $region44: #{dueling_dqn_forward.1} parent=39 // pred_fallthru
        _
    $region40: #{dueling_dqn_forward.1} parent=5 // pred_fallthru
      _
    %p1940 = scmp.le.s32.totalorder 2, %s11
    // Predicated region
    $region45: #{dueling_dqn_forward.1} parent=5 // pred_check
      %p1941 = pneg %p1940
    $region46: #{dueling_dqn_forward.1} parent=5 // pred_check_branch
      %1943 = sbr.rel (%p1941) target = $region48
    $region47: #{dueling_dqn_forward.1} parent=5 // pred_region
      %s1944 = ssub.s32 %s11, 2
      // Predicated region
      $region49: #{dueling_dqn_forward.1} parent=47 // pred_check
        %p1945 = pneg %p150
      $region50: #{dueling_dqn_forward.1} parent=47 // pred_check_branch
        %1947 = sbr.rel (%p1945) target = $region52
      $region51: #{dueling_dqn_forward.1} parent=47 // pred_region
        %p1948 = scmp.lt.s32.totalorder %s17, 1
        %s1949 = scalar_select %p1948, %s17, 1
        %s1950 = smul.addr %s1949, 8
        %s1951 = scalar_lea.vmem %s5, %s1950
      $region52: #{dueling_dqn_forward.1} parent=47 // pred_fallthru
        _
    $region48: #{dueling_dqn_forward.1} parent=5 // pred_fallthru
      _
  $region6: #{dueling_dqn_forward.1} parent=0 // loop_footer
    %s15 = sadd.s32 1, %s11
  $region7: #{dueling_dqn_forward.1} parent=0 // loop_footer_branch
    %10 = sbr.rel target = $region3
  $region8: #{dueling_dqn_forward.1} parent=0 // loop_exit
    _

</llo_original>
